<compile_context>
chip_gen: v7x
topology: tpu7x:2x2x1
jax: 0.10.0
libtpu: 0.0.40
codegen_flags: <defaults>
</compile_context>

<pallas_src>
import math

import jax
import jax.numpy as jnp
from jax.experimental import pallas as pl
from jax.experimental.pallas import tpu as pltpu

_INV_SQRT2 = 1.0 / math.sqrt(2.0)
_GELU_TANH_C = math.sqrt(2.0 / math.pi)


def _round_up(x, m):
    return ((x + m - 1) // m) * m


def _vmem_budget_bytes():
    """Generation-aware VMEM budget with ~25% headroom for Mosaic scratch."""
    phys = 64 * 1024 * 1024                     # conservative (v7x-sized) fallback
    try:
        if hasattr(pltpu, "get_tpu_info"):
            cap = getattr(pltpu.get_tpu_info(), "vmem_capacity_bytes", None)
            if cap:
                phys = int(cap)
    except Exception:
        pass
    return (phys * 3) // 4


def _gelu(h, approx):
    if approx:
        # tanh GELU: transcendental lands on the EUP slot instead of a long
        # erf polynomial on the VALU (v6e/v7x are VALU-bound otherwise).
        return 0.5 * h * (1.0 + jnp.tanh(_GELU_TANH_C * (h + 0.044715 * h * h * h)))
    # exact erf GELU -- parity with torch.nn.GELU() default.
    return 0.5 * h * (1.0 + jax.lax.erf(h * _INV_SQRT2))


def _select_tiles(C, T, H, itm, out_itm, budget, t_tile, h_tile):
    """Pick (tT, tH, resident).  Prefers fully VMEM-resident weights."""
    T128 = _round_up(T, 128)
    H8 = _round_up(H, 8)

    def fits(tT, tH, resident):
        w_mult = 1 if resident else 2                      # single vs double buffered
        w = 2 * C * tH * itm * w_mult                      # W1^T + W2^T tiles
        bias = (tH + _round_up(C, 8)) * 128 * 4 * w_mult   # (n,1) blocks lane-pad to 128
        xblk = 2 * C * tT * itm                            # double-buffered x block
        oblk = 2 * C * tT * out_itm                        # double-buffered out block
        hid = tH * tT * (4 + itm)                          # f32 hidden + matmul-dtype copy
        acc = 0 if resident else C * tT * 4                # f32 accumulator scratch
        slack = 2 * 1024 * 1024                            # Mosaic internal scratch
        return (w + bias + xblk + oblk + hid + acc + slack) <= budget

    if t_tile is None:
        t_cands = sorted({min(c, T128) for c in (1024, 512, 256, 128)}, reverse=True)
    else:
        t_cands = [max(128, min((t_tile // 128) * 128, T128))]

    if h_tile is None:
        # 1) resident weights (no re-streaming from HBM)
        for tT in t_cands:
            if fits(tT, H8, resident=True):
                return tT, H8, True
        # 2) streamed weights with an f32 accumulator over the H reduction axis
        for tT in t_cands:
            for cand in (2048, 1024, 512, 256, 128):
                tH = min(cand, _round_up(H, 128))
                if fits(tT, tH, resident=False):
                    return tT, tH, False
        return t_cands[-1], 128, False
    else:
        if h_tile >= H:
            return t_cands[0], H8, True
        tH = max(128, (min(h_tile, H) // 128) * 128)
        return t_cands[0], tH, False


def ffn_pallas(x_nct, w1, b1, w2, b2, *, matmul_dtype=jnp.bfloat16,
               t_tile=None, h_tile=None, approx_gelu=False, vmem_budget=None):
    """FFN forward in NCT layout.

    x_nct: (B, C, T);  w1: (C, H), b1: (H,), w2: (H, C), b2: (C,)
    returns (B, C, T) in x_nct.dtype.
    """
    B, C, T = x_nct.shape
    H = w1.shape[1]
    assert w1.shape == (C, H) and w2.shape == (H, C)
    assert b1.shape == (H,) and b2.shape == (C,)

    out_dtype = x_nct.dtype
    itm = jnp.dtype(matmul_dtype).itemsize
    out_itm = jnp.dtype(out_dtype).itemsize
    budget = _vmem_budget_bytes() if vmem_budget is None else int(vmem_budget)

    tT, tH, resident = _select_tiles(C, T, H, itm, out_itm, budget, t_tile, h_tile)

    # Time axis is always lane-dense (multiple of 128): unmasked vst + full
    # MXU lanes.  Padded (zero) time columns produce independent garbage that
    # is sliced off (1x1 convs are pointwise over time).
    T_pad = _round_up(_round_up(T, 128), tT)
    H_pad = tH if resident else _round_up(H, tH)
    num_t = T_pad // tT
    num_h = H_pad // tH

    # --- one-time parameter / input prep.  (If the FFN is called repeatedly,
    # hoist the weight transpose+cast out of the hot path: it is an extra
    # read+write of ~6*C*H HBM bytes per call.)
    # Cast x to the MXU feed dtype ONCE here (halves input DMA for bf16 and
    # removes the per-hk in-kernel cast).
    x_in = x_nct.astype(matmul_dtype)
    if T_pad != T:
        x_in = jnp.pad(x_in, ((0, 0), (0, 0), (0, T_pad - T)))
    if H_pad != H:
        # Zero-padded W1 rows + zero b1 -> GELU(0)=0 hidden units; matching
        # zero W2 columns contribute nothing -> numerics unchanged.
        w1 = jnp.pad(w1, ((0, 0), (0, H_pad - H)))
        b1 = jnp.pad(b1, ((0, H_pad - H),))
        w2 = jnp.pad(w2, ((0, H_pad - H), (0, 0)))

    w1t = jnp.transpose(w1).astype(matmul_dtype)       # (H_pad, C)
    w2t = jnp.transpose(w2).astype(matmul_dtype)       # (C, H_pad)
    b1c = b1.reshape(H_pad, 1).astype(jnp.float32)     # broadcast along lanes
    b2c = b2.reshape(C, 1).astype(jnp.float32)

    prec = (jax.lax.Precision.HIGHEST
            if jnp.dtype(matmul_dtype) == jnp.dtype(jnp.float32) else None)

    def resident_kernel(x_ref, w1t_ref, b1_ref, w2t_ref, b2_ref, o_ref):
        h = jnp.dot(w1t_ref[...], x_ref[0],
                    preferred_element_type=jnp.float32, precision=prec)
        h = _gelu(h + b1_ref[...], approx_gelu)
        out = jnp.dot(w2t_ref[...], h.astype(matmul_dtype),
                      preferred_element_type=jnp.float32, precision=prec)
        # Dropout(pdrop=0.0) is the identity on both applications.
        o_ref[0] = (out + b2_ref[...]).astype(o_ref.dtype)

    def streamed_kernel(x_ref, w1t_ref, b1_ref, w2t_ref, b2_ref, o_ref, acc_ref):
        hk = pl.program_id(2)

        @pl.when(hk == 0)
        def _init():
            acc_ref[...] = jnp.zeros_like(acc_ref)

        h = jnp.dot(w1t_ref[...], x_ref[0],
                    preferred_element_type=jnp.float32, precision=prec)
        h = _gelu(h + b1_ref[...], approx_gelu)
        acc_ref[...] += jnp.dot(w2t_ref[...], h.astype(matmul_dtype),
                                preferred_element_type=jnp.float32, precision=prec)

        @pl.when(hk == pl.num_programs(2) - 1)
        def _finalize():
            o_ref[0] = (acc_ref[...] + b2_ref[...]).astype(o_ref.dtype)

    # Honest HBM byte count: weights are re-streamed B*num_t times when the
    # reduction axis exists, read once when resident.
    weight_streams = 1 if resident else B * num_t
    cost = pl.CostEstimate(
        flops=4 * B * T_pad * C * H_pad,                  # two matmuls
        transcendentals=B * T_pad * H_pad,                # one erf per hidden elem
        bytes_accessed=(x_in.size * itm
                        + B * C * T_pad * out_itm
                        + (w1t.size + w2t.size) * itm * weight_streams
                        + (b1c.size + b2c.size) * 4 * weight_streams),
    )

    can_single_buffer = hasattr(pl, "Buffered")

    def build_and_run(single_buffer):
        def const_spec(shape, index_map):
            # Constant-index blocks never change -> single-buffer to free VMEM.
            if single_buffer:
                return pl.BlockSpec(shape, index_map, pipeline_mode=pl.Buffered(1))
            return pl.BlockSpec(shape, index_map)

        if resident:
            grid = (B, num_t)
            in_specs = [
                pl.BlockSpec((1, C, tT), lambda b, t: (b, 0, t)),     # x
                const_spec((H_pad, C),   lambda b, t: (0, 0)),        # W1^T (resident)
                const_spec((H_pad, 1),   lambda b, t: (0, 0)),        # b1
                const_spec((C, H_pad),   lambda b, t: (0, 0)),        # W2^T (resident)
                const_spec((C, 1),       lambda b, t: (0, 0)),        # b2
            ]
            out_specs = pl.BlockSpec((1, C, tT), lambda b, t: (b, 0, t))
            kernel, scratch = resident_kernel, []
            semantics = ("parallel", "parallel")
        else:
            grid = (B, num_t, num_h)
            in_specs = [
                pl.BlockSpec((1, C, tT), lambda b, t, hk: (b, 0, t)),  # x
                pl.BlockSpec((tH, C),    lambda b, t, hk: (hk, 0)),    # W1^T tile
                pl.BlockSpec((tH, 1),    lambda b, t, hk: (hk, 0)),    # b1 tile
                pl.BlockSpec((C, tH),    lambda b, t, hk: (0, hk)),    # W2^T tile
                const_spec((C, 1),       lambda b, t, hk: (0, 0)),     # b2
            ]
            out_specs = pl.BlockSpec((1, C, tT), lambda b, t, hk: (b, 0, t))
            kernel = streamed_kernel
            scratch = [pltpu.VMEM((C, tT), jnp.float32)]               # f32 acc
            semantics = ("parallel", "parallel", "arbitrary")

        fn = pl.pallas_call(
            kernel,
            out_shape=jax.ShapeDtypeStruct((B, C, T_pad), out_dtype),
            grid=grid,
            in_specs=in_specs,
            out_specs=out_specs,
            scratch_shapes=scratch,
            compiler_params=pltpu.CompilerParams(
                dimension_semantics=semantics,
                vmem_limit_bytes=budget,
            ),
            cost_estimate=cost,
        )
        return fn(x_in, w1t, b1c, w2t, b2c)

    if can_single_buffer:
        try:
            out = jax.block_until_ready(build_and_run(True))
        except Exception:
            out = build_and_run(False)
    else:
        out = build_and_run(False)

    return out[:, :, :T] if T_pad != T else out


def ffn_reference(x_nct, w1, b1, w2, b2):
    """Pure-JAX f32 reference matching the PyTorch forward."""
    x = jnp.transpose(x_nct, (0, 2, 1))                            # (B, T, C)
    h = jnp.dot(x, w1, precision=jax.lax.Precision.HIGHEST) + b1
    h = 0.5 * h * (1.0 + jax.lax.erf(h * _INV_SQRT2))
    o = jnp.dot(h, w2, precision=jax.lax.Precision.HIGHEST) + b2
    return jnp.transpose(o, (0, 2, 1))                             # (B, C, T)


if __name__ == "__main__":
    def make_params(key, C, H):
        kw1, kb1, kw2, kb2 = jax.random.split(key, 4)
        bound1 = 1.0 / math.sqrt(C)
        w1 = jax.random.uniform(kw1, (C, H), jnp.float32, -bound1, bound1)
        b1 = jax.random.uniform(kb1, (H,), jnp.float32, -bound1, bound1)
        bound2 = 1.0 / math.sqrt(H)
        w2 = jax.random.uniform(kw2, (H, C), jnp.float32, -bound2, bound2)
        b2 = jax.random.uniform(kb2, (C,), jnp.float32, -bound2, bound2)
        return w1, b1, w2, b2

    key = jax.random.PRNGKey(0)
    k1, k2, k3, k4 = jax.random.split(key, 4)

    # --- Config 1: tiny shapes (B=2, C=4, T=16, expansion=4) ---------------
    # Auto tile selection -> resident-weights path, T lane-padded 16 -> 128.
    B, C, T, expansion = 2, 4, 16, 4
    H = C * expansion
    x = jax.random.normal(k1, (B, C, T), dtype=jnp.float32)
    w1, b1, w2, b2 = make_params(k2, C, H)

    ref = jax.block_until_ready(ffn_reference(x, w1, b1, w2, b2))

    # f32 MXU path (precision=HIGHEST): tight tolerance vs reference.
    out_f32 = jax.block_until_ready(
        ffn_pallas(x, w1, b1, w2, b2, matmul_dtype=jnp.float32))
    assert out_f32.shape == (B, C, T)
    assert jnp.allclose(out_f32, ref, atol=1e-5, rtol=1e-5)

    # bf16 MXU path (default fast path): looser tolerance.
    out_bf16 = jax.block_until_ready(ffn_pallas(x, w1, b1, w2, b2))
    assert out_bf16.shape == (B, C, T)
    assert jnp.allclose(out_bf16, ref, atol=5e-2, rtol=5e-2)

    # --- Config 2: exercises the streamed (reduction-axis) path with the ---
    # --- f32 accumulator and T/H tiling: grid = (2, 2, 2).               ---
    B2, C2, T2, expansion2 = 2, 64, 200, 4
    H2 = C2 * expansion2                                   # 256
    x2 = jax.random.normal(k3, (B2, C2, T2), dtype=jnp.float32)
    w1_2, b1_2, w2_2, b2_2 = make_params(k4, C2, H2)

    ref2 = jax.block_until_ready(ffn_reference(x2, w1_2, b1_2, w2_2, b2_2))
    out2 = jax.block_until_ready(
        ffn_pallas(x2, w1_2, b1_2, w2_2, b2_2, t_tile=128, h_tile=128))
    assert out2.shape == (B2, C2, T2)
    assert jnp.allclose(out2, ref2, atol=5e-2, rtol=5e-2)

    # --- Config 3: same data, auto tiles -> resident path with T padding ---
    out3 = jax.block_until_ready(ffn_pallas(x2, w1_2, b1_2, w2_2, b2_2))
    assert out3.shape == (B2, C2, T2)
    assert jnp.allclose(out3, ref2, atol=5e-2, rtol=5e-2)

    print("KERNEL_OK")
</pallas_src>

<mosaic_0001>
module attributes {stable_mosaic.version = 11 : i64} {
  func.func @resident_kernel(%arg0: i32, %arg1: i32, %arg2: memref<1x4x128xf32, #tpu.memory_space<vmem>>, %arg3: memref<16x4xf32, #tpu.memory_space<vmem>>, %arg4: memref<16x1xf32, #tpu.memory_space<vmem>>, %arg5: memref<4x16xf32, #tpu.memory_space<vmem>>, %arg6: memref<4x1xf32, #tpu.memory_space<vmem>>, %arg7: memref<1x4x128xf32, #tpu.memory_space<vmem>>) attributes {dimension_semantics = [#tpu.dimension_semantics<parallel>, #tpu.dimension_semantics<parallel>], iteration_bounds = array<i64: 2, 1>, scalar_prefetch = 0 : i64, scratch_operands = 0 : i64, tpu.core_type = #tpu.core_type<tc>, window_params = [{transform_indices = @transform_0, window_bounds = array<i64: 1, 4, 128>}, {pipeline_mode = #tpu.pipeline_mode<synchronous>, transform_indices = @transform_1, window_bounds = array<i64: 16, 4>}, {pipeline_mode = #tpu.pipeline_mode<synchronous>, transform_indices = @transform_2, window_bounds = array<i64: 16, 1>}, {pipeline_mode = #tpu.pipeline_mode<synchronous>, transform_indices = @transform_3, window_bounds = array<i64: 4, 16>}, {pipeline_mode = #tpu.pipeline_mode<synchronous>, transform_indices = @transform_4, window_bounds = array<i64: 4, 1>}, {transform_indices = @transform_5, window_bounds = array<i64: 1, 4, 128>}]} {
    %c0 = arith.constant 0 : index
    %c0_0 = arith.constant 0 : index
    %0 = vector.load %arg3[%c0, %c0_0] : memref<16x4xf32, #tpu.memory_space<vmem>>, vector<16x4xf32>
    %c0_1 = arith.constant 0 : index
    %c0_2 = arith.constant 0 : index
    %c0_3 = arith.constant 0 : index
    %1 = vector.load %arg2[%c0_1, %c0_2, %c0_3] : memref<1x4x128xf32, #tpu.memory_space<vmem>>, vector<1x4x128xf32>
    %2 = vector.shape_cast %1 : vector<1x4x128xf32> to vector<4x128xf32>
    %cst = arith.constant dense<0.000000e+00> : vector<16x128xf32>
    %3 = tpu.matmul %0, %2, %cst {dimension_numbers = #tpu.dot_dimension_numbers<[1], [0], [0], [1], [0, 0, 1, 1], [], []>, precision = #tpu.contract_precision<fp32>} : vector<16x4xf32>, vector<4x128xf32>, vector<16x128xf32> -> vector<16x128xf32>
    %c0_4 = arith.constant 0 : index
    %c0_5 = arith.constant 0 : index
    %4 = vector.load %arg4[%c0_4, %c0_5] : memref<16x1xf32, #tpu.memory_space<vmem>>, vector<16x1xf32>
    %5 = vector.broadcast %4 : vector<16x1xf32> to vector<16x128xf32>
    %6 = arith.addf %3, %5 : vector<16x128xf32>
    %cst_6 = arith.constant 5.000000e-01 : f32
    %7 = vector.broadcast %cst_6 : f32 to vector<16x128xf32>
    %8 = arith.mulf %7, %6 : vector<16x128xf32>
    %cst_7 = arith.constant 0.707106769 : f32
    %9 = vector.broadcast %cst_7 : f32 to vector<16x128xf32>
    %10 = arith.mulf %6, %9 : vector<16x128xf32>
    %11 = math.erf %10 : vector<16x128xf32>
    %cst_8 = arith.constant 1.000000e+00 : f32
    %12 = vector.broadcast %cst_8 : f32 to vector<16x128xf32>
    %13 = arith.addf %12, %11 : vector<16x128xf32>
    %14 = arith.mulf %8, %13 : vector<16x128xf32>
    %c0_9 = arith.constant 0 : index
    %c0_10 = arith.constant 0 : index
    %15 = vector.load %arg5[%c0_9, %c0_10] : memref<4x16xf32, #tpu.memory_space<vmem>>, vector<4x16xf32>
    %cst_11 = arith.constant dense<0.000000e+00> : vector<4x128xf32>
    %16 = tpu.matmul %15, %14, %cst_11 {dimension_numbers = #tpu.dot_dimension_numbers<[1], [0], [0], [1], [0, 0, 1, 1], [], []>, precision = #tpu.contract_precision<fp32>} : vector<4x16xf32>, vector<16x128xf32>, vector<4x128xf32> -> vector<4x128xf32>
    %c0_12 = arith.constant 0 : index
    %c0_13 = arith.constant 0 : index
    %17 = vector.load %arg6[%c0_12, %c0_13] : memref<4x1xf32, #tpu.memory_space<vmem>>, vector<4x1xf32>
    %18 = vector.broadcast %17 : vector<4x1xf32> to vector<4x128xf32>
    %19 = arith.addf %16, %18 : vector<4x128xf32>
    %c0_14 = arith.constant 0 : index
    %c0_15 = arith.constant 0 : index
    %c0_16 = arith.constant 0 : index
    %20 = vector.load %arg7[%c0_14, %c0_15, %c0_16] : memref<1x4x128xf32, #tpu.memory_space<vmem>>, vector<1x4x128xf32>
    %21 = vector.shape_cast %20 : vector<1x4x128xf32> to vector<4x128xf32>
    %22 = vector.shape_cast %19 : vector<4x128xf32> to vector<1x4x128xf32>
    tpu.vector_store %arg7[%c0_14, %c0_15, %c0_16], %22 {strides = array<i32>} : memref<1x4x128xf32, #tpu.memory_space<vmem>>, vector<1x4x128xf32>,
    return
  }
  func.func @transform_0(%arg0: i32, %arg1: i32) -> (i32, i32, i32) {
    %c0_i32 = arith.constant 0 : i32
    %c0_i32_0 = arith.constant 0 : i32
    return %arg0, %c0_i32, %arg1 : i32, i32, i32
  }
  func.func @transform_1(%arg0: i32, %arg1: i32) -> (i32, i32) {
    %c0_i32 = arith.constant 0 : i32
    %c0_i32_0 = arith.constant 0 : i32
    %c0_i32_1 = arith.constant 0 : i32
    return %c0_i32, %c0_i32_0 : i32, i32
  }
  func.func @transform_2(%arg0: i32, %arg1: i32) -> (i32, i32) {
    %c0_i32 = arith.constant 0 : i32
    %c0_i32_0 = arith.constant 0 : i32
    %c0_i32_1 = arith.constant 0 : i32
    return %c0_i32, %c0_i32_0 : i32, i32
  }
  func.func @transform_3(%arg0: i32, %arg1: i32) -> (i32, i32) {
    %c0_i32 = arith.constant 0 : i32
    %c0_i32_0 = arith.constant 0 : i32
    %c0_i32_1 = arith.constant 0 : i32
    return %c0_i32, %c0_i32_0 : i32, i32
  }
  func.func @transform_4(%arg0: i32, %arg1: i32) -> (i32, i32) {
    %c0_i32 = arith.constant 0 : i32
    %c0_i32_0 = arith.constant 0 : i32
    %c0_i32_1 = arith.constant 0 : i32
    return %c0_i32, %c0_i32_0 : i32, i32
  }
  func.func @transform_5(%arg0: i32, %arg1: i32) -> (i32, i32, i32) {
    %c0_i32 = arith.constant 0 : i32
    %c0_i32_0 = arith.constant 0 : i32
    return %arg0, %c0_i32, %arg1 : i32, i32, i32
  }
}

module attributes {stable_mosaic.version = 11 : i64} {
  func.func @resident_kernel(%arg0: i32, %arg1: i32, %arg2: memref<1x4x128xf32, #tpu.memory_space<vmem>>, %arg3: memref<16x4xf32, #tpu.memory_space<vmem>>, %arg4: memref<16x1xf32, #tpu.memory_space<vmem>>, %arg5: memref<4x16xf32, #tpu.memory_space<vmem>>, %arg6: memref<4x1xf32, #tpu.memory_space<vmem>>, %arg7: memref<1x4x128xf32, #tpu.memory_space<vmem>>) attributes {dimension_semantics = [#tpu.dimension_semantics<parallel>, #tpu.dimension_semantics<parallel>], iteration_bounds = array<i64: 2, 1>, scalar_prefetch = 0 : i64, scratch_operands = 0 : i64, tpu.core_type = #tpu.core_type<tc>, window_params = [{transform_indices = @transform_0, window_bounds = array<i64: 1, 4, 128>}, {pipeline_mode = #tpu.pipeline_mode<synchronous>, transform_indices = @transform_1, window_bounds = array<i64: 16, 4>}, {pipeline_mode = #tpu.pipeline_mode<synchronous>, transform_indices = @transform_2, window_bounds = array<i64: 16, 1>}, {pipeline_mode = #tpu.pipeline_mode<synchronous>, transform_indices = @transform_3, window_bounds = array<i64: 4, 16>}, {pipeline_mode = #tpu.pipeline_mode<synchronous>, transform_indices = @transform_4, window_bounds = array<i64: 4, 1>}, {transform_indices = @transform_5, window_bounds = array<i64: 1, 4, 128>}]} {
    %c0 = arith.constant 0 : index
    %c0_0 = arith.constant 0 : index
    %0 = vector.load %arg3[%c0, %c0_0] : memref<16x4xf32, #tpu.memory_space<vmem>>, vector<16x4xf32>
    %c0_1 = arith.constant 0 : index
    %c0_2 = arith.constant 0 : index
    %c0_3 = arith.constant 0 : index
    %1 = vector.load %arg2[%c0_1, %c0_2, %c0_3] : memref<1x4x128xf32, #tpu.memory_space<vmem>>, vector<1x4x128xf32>
    %2 = vector.shape_cast %1 : vector<1x4x128xf32> to vector<4x128xf32>
    %cst = arith.constant dense<0.000000e+00> : vector<16x128xf32>
    %3 = tpu.matmul %0, %2, %cst {dimension_numbers = #tpu.dot_dimension_numbers<[1], [0], [0], [1], [0, 0, 1, 1], [], []>, precision = #tpu.contract_precision<fp32>} : vector<16x4xf32>, vector<4x128xf32>, vector<16x128xf32> -> vector<16x128xf32>
    %c0_4 = arith.constant 0 : index
    %c0_5 = arith.constant 0 : index
    %4 = vector.load %arg4[%c0_4, %c0_5] : memref<16x1xf32, #tpu.memory_space<vmem>>, vector<16x1xf32>
    %5 = vector.broadcast %4 : vector<16x1xf32> to vector<16x128xf32>
    %6 = arith.addf %3, %5 : vector<16x128xf32>
    %cst_6 = arith.constant 5.000000e-01 : f32
    %7 = vector.broadcast %cst_6 : f32 to vector<16x128xf32>
    %8 = arith.mulf %7, %6 : vector<16x128xf32>
    %cst_7 = arith.constant 0.707106769 : f32
    %9 = vector.broadcast %cst_7 : f32 to vector<16x128xf32>
    %10 = arith.mulf %6, %9 : vector<16x128xf32>
    %11 = math.erf %10 : vector<16x128xf32>
    %cst_8 = arith.constant 1.000000e+00 : f32
    %12 = vector.broadcast %cst_8 : f32 to vector<16x128xf32>
    %13 = arith.addf %12, %11 : vector<16x128xf32>
    %14 = arith.mulf %8, %13 : vector<16x128xf32>
    %c0_9 = arith.constant 0 : index
    %c0_10 = arith.constant 0 : index
    %15 = vector.load %arg5[%c0_9, %c0_10] : memref<4x16xf32, #tpu.memory_space<vmem>>, vector<4x16xf32>
    %cst_11 = arith.constant dense<0.000000e+00> : vector<4x128xf32>
    %16 = tpu.matmul %15, %14, %cst_11 {dimension_numbers = #tpu.dot_dimension_numbers<[1], [0], [0], [1], [0, 0, 1, 1], [], []>, precision = #tpu.contract_precision<fp32>} : vector<4x16xf32>, vector<16x128xf32>, vector<4x128xf32> -> vector<4x128xf32>
    %c0_12 = arith.constant 0 : index
    %c0_13 = arith.constant 0 : index
    %17 = vector.load %arg6[%c0_12, %c0_13] : memref<4x1xf32, #tpu.memory_space<vmem>>, vector<4x1xf32>
    %18 = vector.broadcast %17 : vector<4x1xf32> to vector<4x128xf32>
    %19 = arith.addf %16, %18 : vector<4x128xf32>
    %c0_14 = arith.constant 0 : index
    %c0_15 = arith.constant 0 : index
    %c0_16 = arith.constant 0 : index
    %20 = vector.load %arg7[%c0_14, %c0_15, %c0_16] : memref<1x4x128xf32, #tpu.memory_space<vmem>>, vector<1x4x128xf32>
    %21 = vector.shape_cast %20 : vector<1x4x128xf32> to vector<4x128xf32>
    %22 = vector.shape_cast %19 : vector<4x128xf32> to vector<1x4x128xf32>
    tpu.vector_store %arg7[%c0_14, %c0_15, %c0_16], %22 {strides = array<i32>} : memref<1x4x128xf32, #tpu.memory_space<vmem>>, vector<1x4x128xf32>,
    return
  }
  func.func @transform_0(%arg0: i32, %arg1: i32) -> (i32, i32, i32) {
    %c0_i32 = arith.constant 0 : i32
    %c0_i32_0 = arith.constant 0 : i32
    return %arg0, %c0_i32, %arg1 : i32, i32, i32
  }
  func.func @transform_1(%arg0: i32, %arg1: i32) -> (i32, i32) {
    %c0_i32 = arith.constant 0 : i32
    %c0_i32_0 = arith.constant 0 : i32
    %c0_i32_1 = arith.constant 0 : i32
    return %c0_i32, %c0_i32_0 : i32, i32
  }
  func.func @transform_2(%arg0: i32, %arg1: i32) -> (i32, i32) {
    %c0_i32 = arith.constant 0 : i32
    %c0_i32_0 = arith.constant 0 : i32
    %c0_i32_1 = arith.constant 0 : i32
    return %c0_i32, %c0_i32_0 : i32, i32
  }
  func.func @transform_3(%arg0: i32, %arg1: i32) -> (i32, i32) {
    %c0_i32 = arith.constant 0 : i32
    %c0_i32_0 = arith.constant 0 : i32
    %c0_i32_1 = arith.constant 0 : i32
    return %c0_i32, %c0_i32_0 : i32, i32
  }
  func.func @transform_4(%arg0: i32, %arg1: i32) -> (i32, i32) {
    %c0_i32 = arith.constant 0 : i32
    %c0_i32_0 = arith.constant 0 : i32
    %c0_i32_1 = arith.constant 0 : i32
    return %c0_i32, %c0_i32_0 : i32, i32
  }
  func.func @transform_5(%arg0: i32, %arg1: i32) -> (i32, i32, i32) {
    %c0_i32 = arith.constant 0 : i32
    %c0_i32_0 = arith.constant 0 : i32
    return %arg0, %c0_i32, %arg1 : i32, i32, i32
  }
}

</mosaic_0001>

<llo_original>
// kernel: tpu_custom_call.1
$region0: #{tpu_custom_call.1}
  #allocation0 [shape = 'u32[]', space=smem, size = 0x4, offset = 0x4, fixed_abs, tag = 'smem constant byte address 0x4 - core index']
  #allocation1 [shape = 'u32[144,128]{1,0:T(1,128)}', space=vmem, size = 0x12000, scoped, tag = 'internal scratch']
  %s0 = inlined_call_operand.vmem [shape: f32[2,4,128], index: 0, kind: input, shape index: {}]
  %s1 = inlined_call_operand.vmem [shape: f32[16,4], index: 1, kind: input, shape index: {}]
  %s2 = inlined_call_operand.vmem [shape: f32[16,1], index: 2, kind: input, shape index: {}]
  %s3 = inlined_call_operand.vmem [shape: f32[4,16], index: 3, kind: input, shape index: {}]
  %s4 = inlined_call_operand.vmem [shape: f32[4,1], index: 4, kind: input, shape index: {}]
  %s5 = inlined_call_operand.hbm [shape: f32[2,4,128], index: 5, kind: output, shape index: {}]
  %s6 = sld [smem:[#allocation0]]
  $region53: #{tpu_custom_call.1} parent=0
    _
  %s8 = ssub.s32 1, %s6
  %s9 = scalar_select 0, %s8, %s6
  $region1: #{tpu_custom_call.1} parent=0
    #allocation2 [shape = 'u8[4096]{0}', space=vmem, size = 0x1000, scoped, tag = 'output window, operand 0']
    #allocation3 [shape = 's32[2]{0}', space=sflag, size = 0x8, scoped, tag = 'scoped memory for tpu_custom_call.1']
    %10 = vsyncpa [#allocation3], 0
    %s11 = scalar_lea.sflag [#allocation3], 1
    %12 = vsyncpa %s11, 0
    loop: start=0, step=1, limit=4
    $region2: #{tpu_custom_call.1} parent=1 // loop_pre_header
      _
    $region3: #{tpu_custom_call.1} parent=1 // loop_header
      %s14 = sphi 0, %s18
      %p15 = scmp.ge.s32.totalorder %s14, 4
      %s21 = sphi 0, %s33
      %s22 = sphi 0, %s29
      %s23 = sphi 0, %s21
      %s24 = sphi 0, %s22
      %s25 = sphi 0, %s23
      %s26 = sphi 0, %s24
      %s38 = sphi 0, %s40
      %s41 = sphi 0, %s38
      %s42 = sphi 0, %s41
      %s58 = sphi 0, %s42
      %s62 = sphi 0, %s62
      %s64 = sphi 0, %s62
      %s65 = sphi 0, %s64
      %s79 = sphi 0, %s65
      %s83 = sphi 0, %s83
      %s85 = sphi 0, %s83
      %s86 = sphi 0, %s85
      %s100 = sphi 0, %s86
      %s104 = sphi 0, %s104
      %s106 = sphi 0, %s104
      %s107 = sphi 0, %s106
      %s121 = sphi 0, %s107
      %s125 = sphi 0, %s125
      %s127 = sphi 0, %s125
      %s128 = sphi 0, %s127
      %s142 = sphi 0, %s128
      %s150 = sphi 0, %s152
      %s153 = sphi 0, %s150
      %s154 = sphi 0, %s153
      %s170 = sphi 0, %s154
    $region4: #{tpu_custom_call.1} parent=1 // loop_header_branch
      %17 = sbr.rel (%p15) target = $region8
    $region5: #{tpu_custom_call.1} parent=1 // loop_body
      %s19 = ssub.s32 %s14, 1
      %s20 = ssub.s32 %s14, 2
      %s27 = sadd.s32 1, %s22
      %p28 = scmp.ge.s32.totalorder %s27, 1
      %s29 = scalar_select %p28, 0, %s27
      %s30 = sadd.s32 1, %s21
      %s31 = scalar_select %p28, %s30, %s21
      %p32 = scmp.ge.s32.totalorder %s31, 2
      %s33 = scalar_select %p32, 0, %s31
      %s34 = ssub.s32 %s21, %s33
      %s35 = ssub.s32 %s22, %s29
      %s36 = sor.u32 %s34, %s35
      %p37 = scmp.eq.s32.totalorder %s36, 0
      %s39 = sadd.s32 %s38, 1
      %s40 = scalar_select %p37, %s38, %s39
      %p43 = pneg %p37
      %p44 = scmp.eq.s32.totalorder %s14, 1
      %p45 = por %p43, %p44
      %p46 = scmp.ne.s32.totalorder %s38, %s41
      %p47 = scmp.eq.s32.totalorder %s14, 0
      %p48 = por %p46, %p47
      %p49 = scmp.ne.s32.totalorder %s38, %s41
      %p50 = scmp.eq.s32.totalorder %s19, 1
      %p51 = por %p49, %p50
      %p52 = scmp.ne.s32.totalorder %s41, %s42
      %p53 = scmp.eq.s32.totalorder %s19, 0
      %p54 = por %p52, %p53
      %p55 = scmp.ne.s32.totalorder %s41, %s42
      %p56 = scmp.eq.s32.totalorder %s20, 1
      %p57 = por %p55, %p56
      %p59 = scmp.ne.s32.totalorder %s42, %s58
      %p60 = scmp.eq.s32.totalorder %s20, 0
      %p61 = por %p59, %p60
      %s63 = sadd.s32 %s62, 1
      %p66 = scmp.eq.s32.totalorder %s14, 1
      %p67 = scmp.ne.s32.totalorder %s62, %s64
      %p68 = scmp.eq.s32.totalorder %s14, 0
      %p69 = por %p67, %p68
      %p70 = scmp.ne.s32.totalorder %s62, %s64
      %p71 = scmp.eq.s32.totalorder %s19, 1
      %p72 = por %p70, %p71
      %p73 = scmp.ne.s32.totalorder %s64, %s65
      %p74 = scmp.eq.s32.totalorder %s19, 0
      %p75 = por %p73, %p74
      %p76 = scmp.ne.s32.totalorder %s64, %s65
      %p77 = scmp.eq.s32.totalorder %s20, 1
      %p78 = por %p76, %p77
      %p80 = scmp.ne.s32.totalorder %s65, %s79
      %p81 = scmp.eq.s32.totalorder %s20, 0
      %p82 = por %p80, %p81
      %s84 = sadd.s32 %s83, 1
      %p87 = scmp.eq.s32.totalorder %s14, 1
      %p88 = scmp.ne.s32.totalorder %s83, %s85
      %p89 = scmp.eq.s32.totalorder %s14, 0
      %p90 = por %p88, %p89
      %p91 = scmp.ne.s32.totalorder %s83, %s85
      %p92 = scmp.eq.s32.totalorder %s19, 1
      %p93 = por %p91, %p92
      %p94 = scmp.ne.s32.totalorder %s85, %s86
      %p95 = scmp.eq.s32.totalorder %s19, 0
      %p96 = por %p94, %p95
      %p97 = scmp.ne.s32.totalorder %s85, %s86
      %p98 = scmp.eq.s32.totalorder %s20, 1
      %p99 = por %p97, %p98
      %p101 = scmp.ne.s32.totalorder %s86, %s100
      %p102 = scmp.eq.s32.totalorder %s20, 0
      %p103 = por %p101, %p102
      %s105 = sadd.s32 %s104, 1
      %p108 = scmp.eq.s32.totalorder %s14, 1
      %p109 = scmp.ne.s32.totalorder %s104, %s106
      %p110 = scmp.eq.s32.totalorder %s14, 0
      %p111 = por %p109, %p110
      %p112 = scmp.ne.s32.totalorder %s104, %s106
      %p113 = scmp.eq.s32.totalorder %s19, 1
      %p114 = por %p112, %p113
      %p115 = scmp.ne.s32.totalorder %s106, %s107
      %p116 = scmp.eq.s32.totalorder %s19, 0
      %p117 = por %p115, %p116
      %p118 = scmp.ne.s32.totalorder %s106, %s107
      %p119 = scmp.eq.s32.totalorder %s20, 1
      %p120 = por %p118, %p119
      %p122 = scmp.ne.s32.totalorder %s107, %s121
      %p123 = scmp.eq.s32.totalorder %s20, 0
      %p124 = por %p122, %p123
      %s126 = sadd.s32 %s125, 1
      %p129 = scmp.eq.s32.totalorder %s14, 1
      %p130 = scmp.ne.s32.totalorder %s125, %s127
      %p131 = scmp.eq.s32.totalorder %s14, 0
      %p132 = por %p130, %p131
      %p133 = scmp.ne.s32.totalorder %s125, %s127
      %p134 = scmp.eq.s32.totalorder %s19, 1
      %p135 = por %p133, %p134
      %p136 = scmp.ne.s32.totalorder %s127, %s128
      %p137 = scmp.eq.s32.totalorder %s19, 0
      %p138 = por %p136, %p137
      %p139 = scmp.ne.s32.totalorder %s127, %s128
      %p140 = scmp.eq.s32.totalorder %s20, 1
      %p141 = por %p139, %p140
      %p143 = scmp.ne.s32.totalorder %s128, %s142
      %p144 = scmp.eq.s32.totalorder %s20, 0
      %p145 = por %p143, %p144
      %s146 = ssub.s32 %s21, %s33
      %s147 = ssub.s32 %s22, %s29
      %s148 = sor.u32 %s146, %s147
      %p149 = scmp.eq.s32.totalorder %s148, 0
      %s151 = sadd.s32 %s150, 1
      %s152 = scalar_select %p149, %s150, %s151
      %p155 = pneg %p149
      %p156 = scmp.eq.s32.totalorder %s14, 1
      %p157 = por %p155, %p156
      %p158 = scmp.ne.s32.totalorder %s150, %s153
      %p159 = scmp.eq.s32.totalorder %s14, 0
      %p160 = por %p158, %p159
      %p161 = scmp.ne.s32.totalorder %s150, %s153
      %p162 = scmp.eq.s32.totalorder %s19, 1
      %p163 = por %p161, %p162
      %p164 = scmp.ne.s32.totalorder %s153, %s154
      %p165 = scmp.eq.s32.totalorder %s19, 0
      %p166 = por %p164, %p165
      %p167 = scmp.ne.s32.totalorder %s153, %s154
      %p168 = scmp.eq.s32.totalorder %s20, 1
      %p169 = por %p167, %p168
      %p171 = scmp.ne.s32.totalorder %s154, %s170
      %p172 = scmp.eq.s32.totalorder %s20, 0
      %p173 = por %p171, %p172
      %p174 = scmp.le.s32.totalorder 1, %s14
      %p175 = scmp.lt.s32.totalorder %s14, 3
      %p176 = pnand %p174, %p175
      %p177 = pneg %p176
      // Predicated region
      $region9: #{tpu_custom_call.1} parent=5 // pred_check
        _
      $region10: #{tpu_custom_call.1} parent=5 // pred_check_branch
        %179 = sbr.rel (%p176) target = $region12
      $region11: #{tpu_custom_call.1} parent=5 // pred_region
        %s180 = ssub.s32 %s14, 1
        // Predicated region
        $region13: #{tpu_custom_call.1} parent=11 // pred_check
          %p181 = pneg %p75
        $region14: #{tpu_custom_call.1} parent=11 // pred_check_branch
          %183 = sbr.rel (%p181) target = $region16
        $region15: #{tpu_custom_call.1} parent=11 // pred_region
          _
        $region16: #{tpu_custom_call.1} parent=11 // pred_fallthru
          _
        // Predicated region
        $region17: #{tpu_custom_call.1} parent=11 // pred_check
          %p184 = pneg %p96
        $region18: #{tpu_custom_call.1} parent=11 // pred_check_branch
          %186 = sbr.rel (%p184) target = $region20
        $region19: #{tpu_custom_call.1} parent=11 // pred_region
          _
        $region20: #{tpu_custom_call.1} parent=11 // pred_fallthru
          _
        // Predicated region
        $region21: #{tpu_custom_call.1} parent=11 // pred_check
          %p187 = pneg %p117
        $region22: #{tpu_custom_call.1} parent=11 // pred_check_branch
          %189 = sbr.rel (%p187) target = $region24
        $region23: #{tpu_custom_call.1} parent=11 // pred_region
          _
        $region24: #{tpu_custom_call.1} parent=11 // pred_fallthru
          _
        // Predicated region
        $region25: #{tpu_custom_call.1} parent=11 // pred_check
          %p190 = pneg %p138
        $region26: #{tpu_custom_call.1} parent=11 // pred_check_branch
          %192 = sbr.rel (%p190) target = $region28
        $region27: #{tpu_custom_call.1} parent=11 // pred_region
          _
        $region28: #{tpu_custom_call.1} parent=11 // pred_fallthru
          _
      $region12: #{tpu_custom_call.1} parent=5 // pred_fallthru
        _
      %p193 = scmp.lt.s32.totalorder %s14, 2
      // Predicated region
      $region29: #{tpu_custom_call.1} parent=5 // pred_check
        %p194 = pneg %p193
      $region30: #{tpu_custom_call.1} parent=5 // pred_check_branch
        %196 = sbr.rel (%p194) target = $region32
      $region31: #{tpu_custom_call.1} parent=5 // pred_region
        // Predicated region
        $region33: #{tpu_custom_call.1} parent=31 // pred_check
          %p197 = pneg %p48
        $region34: #{tpu_custom_call.1} parent=31 // pred_check_branch
          %199 = sbr.rel (%p197) target = $region36
        $region35: #{tpu_custom_call.1} parent=31 // pred_region
          %p200 = scmp.lt.s32.totalorder %s21, 1
          %s201 = scalar_select %p200, %s21, 1
          %p202 = scmp.lt.s32.totalorder %s22, 0
          %s203 = scalar_select %p202, %s22, 0
          %s204 = sadd.s32 %s203, %s201
          %s205 = smul.addr %s204, 4
          %s206 = scalar_lea.vmem %s0, %s205
        $region36: #{tpu_custom_call.1} parent=31 // pred_fallthru
          _
      $region32: #{tpu_custom_call.1} parent=5 // pred_fallthru
        _
      %p207 = scmp.le.s32.totalorder 1, %s14
      %p208 = scmp.lt.s32.totalorder %s14, 3
      %p209 = pnand %p207, %p208
      %p210 = pneg %p209
      // Predicated region
      $region37: #{tpu_custom_call.1} parent=5 // pred_check
        _
      $region38: #{tpu_custom_call.1} parent=5 // pred_check_branch
        %212 = sbr.rel (%p209) target = $region40
      $region39: #{tpu_custom_call.1} parent=5 // pred_region
        %s213 = ssub.s32 %s14, 1
        %p214 = scmp.lt.s32.totalorder %s23, 1
        %s215 = scalar_select %p214, %s23, 1
        %p216 = scmp.lt.s32.totalorder %s24, 0
        %s217 = scalar_select %p216, %s24, 0
        %s218 = sadd.s32 %s217, %s215
        %s219 = smul.addr %s218, 4
        %s220 = scalar_lea.vmem %s0, %s219
        %p221 = pneg %p54
        %p222 = pneg %p51
        %p223 = pneg %p75
        %p224 = pneg %p72
        %p225 = pneg %p96
        %p226 = pneg %p93
        %p227 = pneg %p117
        %p228 = pneg %p114
        %p229 = pneg %p138
        %p230 = pneg %p135
        %p231 = pneg %p166
        %p232 = pneg %p163
        %s233 = sand.u32 %s153, 1
        %s234 = scalar_lea.sflag [#allocation3], %s233
        %s235 = sand.u32 %s153, 1
        %s236 = smul.addr %s235, 4
        %s237 = scalar_lea.vmem [#allocation2], %s236
        %p238 = scmp.lt.s32.totalorder %s23, 1
        %s239 = scalar_select %p238, %s23, 1
        %p240 = scmp.lt.s32.totalorder %s24, 0
        %s241 = scalar_select %p240, %s24, 0
        %s242 = sadd.s32 %s241, %s239
        %s243 = smul.addr %s242, 4
        %s244 = scalar_lea.vmem %s0, %s243
        %v245 = vld [vmem:[%s1] sm:$0xff]
        %v246 = vld [vmem:[%s1 + $0x8] sm:$0xff]
        %v247 = vld [vmem:[%s244] sm:$0xf]
        %v248 = vld [vmem:[%s2] sm:$0xff]
        %v249 = vld [vmem:[%s2 + $0x8] sm:$0xff]
        %251 = vset.pattern.permute.xlu0 0
        %252 = vperm.xlu0 %251, %v248
        %v253 = vpop.permute.xlu0 %252
        %256 = vset.pattern.permute.xlu0 0
        %257 = vperm.xlu0 %256, %v249
        %v258 = vpop.permute.xlu0 %257
        %vm260 = vcmask 31744
        %v262 = vsel %vm260, %v245, 0
        %v265 = vsel %vm260, %v246, 0
        %vm267 = vcmask 1043456
        %v269 = vsel %vm267, %v247, 0
        %271 = vmatprep.subr.mxu0 0.0
        %v272 = vand.u32 %v269, 4294901760
        %273 = vmatpush1.msra.mxu0 %v272
        %274 = vmatprep.subr.mxu0 0.0
        %275 = vmatpush1.msra.mxu0 0.0
        %276 = vmatprep.subr.mxu0 0.0
        %277 = vmatpush1.msra.mxu0 0.0
        %278 = vmatprep.subr.mxu0 0.0
        %279 = vmatpush1.msra.mxu0 0.0
        %280 = vmatprep.subr.mxu0 0.0
        %281 = vmatpush1.msra.mxu0 0.0
        %282 = vmatprep.subr.mxu0 0.0
        %283 = vmatpush1.msra.mxu0 0.0
        %284 = vmatprep.subr.mxu0 0.0
        %285 = vmatpush1.msra.mxu0 0.0
        %286 = vmatprep.subr.mxu0 0.0
        %287 = vmatpush1.msra.mxu0 0.0
        %288 = vmatprep.subr.mxu0 0.0
        %289 = vmatpush1.msra.mxu0 0.0
        %290 = vmatprep.subr.mxu0 0.0
        %291 = vmatpush1.msra.mxu0 0.0
        %292 = vmatprep.subr.mxu0 0.0
        %293 = vmatpush1.msra.mxu0 0.0
        %294 = vmatprep.subr.mxu0 0.0
        %295 = vmatpush1.msra.mxu0 0.0
        %296 = vmatprep.subr.mxu0 0.0
        %297 = vmatpush1.msra.mxu0 0.0
        %298 = vmatprep.subr.mxu0 0.0
        %299 = vmatpush1.msra.mxu0 0.0
        %300 = vmatprep.subr.mxu0 0.0
        %301 = vmatpush1.msra.mxu0 0.0
        %302 = vmatprep.subr.mxu0 0.0
        %303 = vmatpush1.msra.mxu0 0.0
        %304 = vmatprep.subr.mxu0 0.0
        %305 = vmatpush1.msra.mxu0 0.0
        %306 = vmatprep.subr.mxu0 0.0
        %307 = vmatpush1.msra.mxu0 0.0
        %308 = vmatprep.subr.mxu0 0.0
        %309 = vmatpush1.msra.mxu0 0.0
        %310 = vmatprep.subr.mxu0 0.0
        %311 = vmatpush1.msra.mxu0 0.0
        %312 = vmatprep.subr.mxu0 0.0
        %313 = vmatpush1.msra.mxu0 0.0
        %314 = vmatprep.subr.mxu0 0.0
        %315 = vmatpush1.msra.mxu0 0.0
        %316 = vmatprep.subr.mxu0 0.0
        %317 = vmatpush1.msra.mxu0 0.0
        %318 = vmatprep.subr.mxu0 0.0
        %319 = vmatpush1.msra.mxu0 0.0
        %320 = vmatprep.subr.mxu0 0.0
        %321 = vmatpush1.msra.mxu0 0.0
        %322 = vmatprep.subr.mxu0 0.0
        %323 = vmatpush1.msra.mxu0 0.0
        %324 = vmatprep.subr.mxu0 0.0
        %325 = vmatpush1.msra.mxu0 0.0
        %326 = vmatprep.subr.mxu0 0.0
        %327 = vmatpush1.msra.mxu0 0.0
        %328 = vmatprep.subr.mxu0 0.0
        %329 = vmatpush1.msra.mxu0 0.0
        %330 = vmatprep.subr.mxu0 0.0
        %331 = vmatpush1.msra.mxu0 0.0
        %332 = vmatprep.subr.mxu0 0.0
        %333 = vmatpush1.msra.mxu0 0.0
        %334 = vmatprep.subr.mxu0 0.0
        %335 = vmatpush1.msra.mxu0 0.0
        %336 = vmatprep.mubr.f32.mxu0 0.0
        %v337 = vand.u32 %v262, 4294901760
        %v338 = vsub.f32 %v262, %v337
        %v339 = vand.u32 %v338, 4294901760
        %v340 = vsub.f32 %v338, %v339
        %v341 = vand.u32 %v340, 4294901760
        %342 = vmatmul.mubr.f32.gmra.mrb[0].mxu0 %v341
        %v343 = vpop.f32.mrb[0].mxu0
        %v344 = vadd.f32 %v253, %v343
        %v345 = vpop.f32.mrb[0].mxu0
        %346 = vmatprep.mubr.f32.mxu0 0.0
        %v347 = vand.u32 %v265, 4294901760
        %v348 = vsub.f32 %v265, %v347
        %v349 = vand.u32 %v348, 4294901760
        %v350 = vsub.f32 %v348, %v349
        %v351 = vand.u32 %v350, 4294901760
        %352 = vmatmul.mubr.f32.gmra.mrb[0].mxu0 %v351
        %v353 = vpop.f32.mrb[0].mxu0
        %v354 = vadd.f32 %v258, %v353
        %v355 = vpop.f32.mrb[0].mxu0
        %356 = vdwg.mxu0
        %357 = vmatprep.subr.mxu0 0.0
        %v358 = vand.u32 %v269, 4294901760
        %v359 = vsub.f32 %v269, %v358
        %v360 = vand.u32 %v359, 4294901760
        %v361 = vsub.f32 %v359, %v360
        %v362 = vand.u32 %v361, 4294901760
        %363 = vmatpush1.msra.mxu0 %v362
        %364 = vmatprep.subr.mxu0 0.0
        %365 = vmatpush1.msra.mxu0 0.0
        %366 = vmatprep.subr.mxu0 0.0
        %367 = vmatpush1.msra.mxu0 0.0
        %368 = vmatprep.subr.mxu0 0.0
        %369 = vmatpush1.msra.mxu0 0.0
        %370 = vmatprep.subr.mxu0 0.0
        %371 = vmatpush1.msra.mxu0 0.0
        %372 = vmatprep.subr.mxu0 0.0
        %373 = vmatpush1.msra.mxu0 0.0
        %374 = vmatprep.subr.mxu0 0.0
        %375 = vmatpush1.msra.mxu0 0.0
        %376 = vmatprep.subr.mxu0 0.0
        %377 = vmatpush1.msra.mxu0 0.0
        %378 = vmatprep.subr.mxu0 0.0
        %379 = vmatpush1.msra.mxu0 0.0
        %380 = vmatprep.subr.mxu0 0.0
        %381 = vmatpush1.msra.mxu0 0.0
        %382 = vmatprep.subr.mxu0 0.0
        %383 = vmatpush1.msra.mxu0 0.0
        %384 = vmatprep.subr.mxu0 0.0
        %385 = vmatpush1.msra.mxu0 0.0
        %386 = vmatprep.subr.mxu0 0.0
        %387 = vmatpush1.msra.mxu0 0.0
        %388 = vmatprep.subr.mxu0 0.0
        %389 = vmatpush1.msra.mxu0 0.0
        %390 = vmatprep.subr.mxu0 0.0
        %391 = vmatpush1.msra.mxu0 0.0
        %392 = vmatprep.subr.mxu0 0.0
        %393 = vmatpush1.msra.mxu0 0.0
        %394 = vmatprep.subr.mxu0 0.0
        %395 = vmatpush1.msra.mxu0 0.0
        %396 = vmatprep.subr.mxu0 0.0
        %397 = vmatpush1.msra.mxu0 0.0
        %398 = vmatprep.subr.mxu0 0.0
        %399 = vmatpush1.msra.mxu0 0.0
        %400 = vmatprep.subr.mxu0 0.0
        %401 = vmatpush1.msra.mxu0 0.0
        %402 = vmatprep.subr.mxu0 0.0
        %403 = vmatpush1.msra.mxu0 0.0
        %404 = vmatprep.subr.mxu0 0.0
        %405 = vmatpush1.msra.mxu0 0.0
        %406 = vmatprep.subr.mxu0 0.0
        %407 = vmatpush1.msra.mxu0 0.0
        %408 = vmatprep.subr.mxu0 0.0
        %409 = vmatpush1.msra.mxu0 0.0
        %410 = vmatprep.subr.mxu0 0.0
        %411 = vmatpush1.msra.mxu0 0.0
        %412 = vmatprep.subr.mxu0 0.0
        %413 = vmatpush1.msra.mxu0 0.0
        %414 = vmatprep.subr.mxu0 0.0
        %415 = vmatpush1.msra.mxu0 0.0
        %416 = vmatprep.subr.mxu0 0.0
        %417 = vmatpush1.msra.mxu0 0.0
        %418 = vmatprep.subr.mxu0 0.0
        %419 = vmatpush1.msra.mxu0 0.0
        %420 = vmatprep.subr.mxu0 0.0
        %421 = vmatpush1.msra.mxu0 0.0
        %422 = vmatprep.subr.mxu0 0.0
        %423 = vmatpush1.msra.mxu0 0.0
        %424 = vmatprep.subr.mxu0 0.0
        %425 = vmatpush1.msra.mxu0 0.0
        %426 = vmatprep.mubr.f32.mxu0 0.0
        %v427 = vand.u32 %v262, 4294901760
        %428 = vmatmul.mubr.f32.gmra.mrb[0].mxu0 %v427
        %v429 = vpop.f32.mrb[0].mxu0
        %v430 = vadd.f32 %v344, %v429
        %v431 = vpop.f32.mrb[0].mxu0
        %432 = vmatprep.mubr.f32.mxu0 0.0
        %v433 = vand.u32 %v265, 4294901760
        %434 = vmatmul.mubr.f32.gmra.mrb[0].mxu0 %v433
        %v435 = vpop.f32.mrb[0].mxu0
        %v436 = vadd.f32 %v354, %v435
        %v437 = vpop.f32.mrb[0].mxu0
        %438 = vdwg.mxu0
        %439 = vmatprep.subr.mxu0 0.0
        %v440 = vand.u32 %v269, 4294901760
        %v441 = vsub.f32 %v269, %v440
        %442 = vmatpush1.msra.mxu0 %v441
        %443 = vmatprep.subr.mxu0 0.0
        %444 = vmatpush1.msra.mxu0 0.0
        %445 = vmatprep.subr.mxu0 0.0
        %446 = vmatpush1.msra.mxu0 0.0
        %447 = vmatprep.subr.mxu0 0.0
        %448 = vmatpush1.msra.mxu0 0.0
        %449 = vmatprep.subr.mxu0 0.0
        %450 = vmatpush1.msra.mxu0 0.0
        %451 = vmatprep.subr.mxu0 0.0
        %452 = vmatpush1.msra.mxu0 0.0
        %453 = vmatprep.subr.mxu0 0.0
        %454 = vmatpush1.msra.mxu0 0.0
        %455 = vmatprep.subr.mxu0 0.0
        %456 = vmatpush1.msra.mxu0 0.0
        %457 = vmatprep.subr.mxu0 0.0
        %458 = vmatpush1.msra.mxu0 0.0
        %459 = vmatprep.subr.mxu0 0.0
        %460 = vmatpush1.msra.mxu0 0.0
        %461 = vmatprep.subr.mxu0 0.0
        %462 = vmatpush1.msra.mxu0 0.0
        %463 = vmatprep.subr.mxu0 0.0
        %464 = vmatpush1.msra.mxu0 0.0
        %465 = vmatprep.subr.mxu0 0.0
        %466 = vmatpush1.msra.mxu0 0.0
        %467 = vmatprep.subr.mxu0 0.0
        %468 = vmatpush1.msra.mxu0 0.0
        %469 = vmatprep.subr.mxu0 0.0
        %470 = vmatpush1.msra.mxu0 0.0
        %471 = vmatprep.subr.mxu0 0.0
        %472 = vmatpush1.msra.mxu0 0.0
        %473 = vmatprep.subr.mxu0 0.0
        %474 = vmatpush1.msra.mxu0 0.0
        %475 = vmatprep.subr.mxu0 0.0
        %476 = vmatpush1.msra.mxu0 0.0
        %477 = vmatprep.subr.mxu0 0.0
        %478 = vmatpush1.msra.mxu0 0.0
        %479 = vmatprep.subr.mxu0 0.0
        %480 = vmatpush1.msra.mxu0 0.0
        %481 = vmatprep.subr.mxu0 0.0
        %482 = vmatpush1.msra.mxu0 0.0
        %483 = vmatprep.subr.mxu0 0.0
        %484 = vmatpush1.msra.mxu0 0.0
        %485 = vmatprep.subr.mxu0 0.0
        %486 = vmatpush1.msra.mxu0 0.0
        %487 = vmatprep.subr.mxu0 0.0
        %488 = vmatpush1.msra.mxu0 0.0
        %489 = vmatprep.subr.mxu0 0.0
        %490 = vmatpush1.msra.mxu0 0.0
        %491 = vmatprep.subr.mxu0 0.0
        %492 = vmatpush1.msra.mxu0 0.0
        %493 = vmatprep.subr.mxu0 0.0
        %494 = vmatpush1.msra.mxu0 0.0
        %495 = vmatprep.subr.mxu0 0.0
        %496 = vmatpush1.msra.mxu0 0.0
        %497 = vmatprep.subr.mxu0 0.0
        %498 = vmatpush1.msra.mxu0 0.0
        %499 = vmatprep.subr.mxu0 0.0
        %500 = vmatpush1.msra.mxu0 0.0
        %501 = vmatprep.subr.mxu0 0.0
        %502 = vmatpush1.msra.mxu0 0.0
        %503 = vmatprep.subr.mxu0 0.0
        %504 = vmatpush1.msra.mxu0 0.0
        %505 = vmatprep.mubr.f32.mxu0 0.0
        %v506 = vand.u32 %v262, 4294901760
        %v507 = vsub.f32 %v262, %v506
        %508 = vmatmul.mubr.f32.gmra.mrb[0].mxu0 %v507
        %v509 = vpop.f32.mrb[0].mxu0
        %v510 = vadd.f32 %v430, %v509
        %v511 = vpop.f32.mrb[0].mxu0
        %512 = vmatprep.mubr.f32.mxu0 0.0
        %v513 = vand.u32 %v265, 4294901760
        %v514 = vsub.f32 %v265, %v513
        %515 = vmatmul.mubr.f32.gmra.mrb[0].mxu0 %v514
        %v516 = vpop.f32.mrb[0].mxu0
        %v517 = vadd.f32 %v436, %v516
        %v518 = vpop.f32.mrb[0].mxu0
        %519 = vdwg.mxu0
        %520 = vmatprep.subr.mxu0 0.0
        %v521 = vand.u32 %v269, 4294901760
        %522 = vmatpush1.msra.mxu0 %v521
        %523 = vmatprep.subr.mxu0 0.0
        %524 = vmatpush1.msra.mxu0 0.0
        %525 = vmatprep.subr.mxu0 0.0
        %526 = vmatpush1.msra.mxu0 0.0
        %527 = vmatprep.subr.mxu0 0.0
        %528 = vmatpush1.msra.mxu0 0.0
        %529 = vmatprep.subr.mxu0 0.0
        %530 = vmatpush1.msra.mxu0 0.0
        %531 = vmatprep.subr.mxu0 0.0
        %532 = vmatpush1.msra.mxu0 0.0
        %533 = vmatprep.subr.mxu0 0.0
        %534 = vmatpush1.msra.mxu0 0.0
        %535 = vmatprep.subr.mxu0 0.0
        %536 = vmatpush1.msra.mxu0 0.0
        %537 = vmatprep.subr.mxu0 0.0
        %538 = vmatpush1.msra.mxu0 0.0
        %539 = vmatprep.subr.mxu0 0.0
        %540 = vmatpush1.msra.mxu0 0.0
        %541 = vmatprep.subr.mxu0 0.0
        %542 = vmatpush1.msra.mxu0 0.0
        %543 = vmatprep.subr.mxu0 0.0
        %544 = vmatpush1.msra.mxu0 0.0
        %545 = vmatprep.subr.mxu0 0.0
        %546 = vmatpush1.msra.mxu0 0.0
        %547 = vmatprep.subr.mxu0 0.0
        %548 = vmatpush1.msra.mxu0 0.0
        %549 = vmatprep.subr.mxu0 0.0
        %550 = vmatpush1.msra.mxu0 0.0
        %551 = vmatprep.subr.mxu0 0.0
        %552 = vmatpush1.msra.mxu0 0.0
        %553 = vmatprep.subr.mxu0 0.0
        %554 = vmatpush1.msra.mxu0 0.0
        %555 = vmatprep.subr.mxu0 0.0
        %556 = vmatpush1.msra.mxu0 0.0
        %557 = vmatprep.subr.mxu0 0.0
        %558 = vmatpush1.msra.mxu0 0.0
        %559 = vmatprep.subr.mxu0 0.0
        %560 = vmatpush1.msra.mxu0 0.0
        %561 = vmatprep.subr.mxu0 0.0
        %562 = vmatpush1.msra.mxu0 0.0
        %563 = vmatprep.subr.mxu0 0.0
        %564 = vmatpush1.msra.mxu0 0.0
        %565 = vmatprep.subr.mxu0 0.0
        %566 = vmatpush1.msra.mxu0 0.0
        %567 = vmatprep.subr.mxu0 0.0
        %568 = vmatpush1.msra.mxu0 0.0
        %569 = vmatprep.subr.mxu0 0.0
        %570 = vmatpush1.msra.mxu0 0.0
        %571 = vmatprep.subr.mxu0 0.0
        %572 = vmatpush1.msra.mxu0 0.0
        %573 = vmatprep.subr.mxu0 0.0
        %574 = vmatpush1.msra.mxu0 0.0
        %575 = vmatprep.subr.mxu0 0.0
        %576 = vmatpush1.msra.mxu0 0.0
        %577 = vmatprep.subr.mxu0 0.0
        %578 = vmatpush1.msra.mxu0 0.0
        %579 = vmatprep.subr.mxu0 0.0
        %580 = vmatpush1.msra.mxu0 0.0
        %581 = vmatprep.subr.mxu0 0.0
        %582 = vmatpush1.msra.mxu0 0.0
        %583 = vmatprep.subr.mxu0 0.0
        %584 = vmatpush1.msra.mxu0 0.0
        %585 = vmatprep.mubr.f32.mxu0 0.0
        %v586 = vand.u32 %v262, 4294901760
        %v587 = vsub.f32 %v262, %v586
        %v588 = vand.u32 %v587, 4294901760
        %589 = vmatmul.mubr.f32.gmra.mrb[0].mxu0 %v588
        %v590 = vpop.f32.mrb[0].mxu0
        %v591 = vadd.f32 %v510, %v590
        %v592 = vpop.f32.mrb[0].mxu0
        %593 = vmatprep.mubr.f32.mxu0 0.0
        %v594 = vand.u32 %v265, 4294901760
        %v595 = vsub.f32 %v265, %v594
        %v596 = vand.u32 %v595, 4294901760
        %597 = vmatmul.mubr.f32.gmra.mrb[0].mxu0 %v596
        %v598 = vpop.f32.mrb[0].mxu0
        %v599 = vadd.f32 %v517, %v598
        %v600 = vpop.f32.mrb[0].mxu0
        %601 = vdwg.mxu0
        %602 = vmatprep.subr.mxu0 0.0
        %v603 = vand.u32 %v269, 4294901760
        %v604 = vsub.f32 %v269, %v603
        %v605 = vand.u32 %v604, 4294901760
        %606 = vmatpush1.msra.mxu0 %v605
        %607 = vmatprep.subr.mxu0 0.0
        %608 = vmatpush1.msra.mxu0 0.0
        %609 = vmatprep.subr.mxu0 0.0
        %610 = vmatpush1.msra.mxu0 0.0
        %611 = vmatprep.subr.mxu0 0.0
        %612 = vmatpush1.msra.mxu0 0.0
        %613 = vmatprep.subr.mxu0 0.0
        %614 = vmatpush1.msra.mxu0 0.0
        %615 = vmatprep.subr.mxu0 0.0
        %616 = vmatpush1.msra.mxu0 0.0
        %617 = vmatprep.subr.mxu0 0.0
        %618 = vmatpush1.msra.mxu0 0.0
        %619 = vmatprep.subr.mxu0 0.0
        %620 = vmatpush1.msra.mxu0 0.0
        %621 = vmatprep.subr.mxu0 0.0
        %622 = vmatpush1.msra.mxu0 0.0
        %623 = vmatprep.subr.mxu0 0.0
        %624 = vmatpush1.msra.mxu0 0.0
        %625 = vmatprep.subr.mxu0 0.0
        %626 = vmatpush1.msra.mxu0 0.0
        %627 = vmatprep.subr.mxu0 0.0
        %628 = vmatpush1.msra.mxu0 0.0
        %629 = vmatprep.subr.mxu0 0.0
        %630 = vmatpush1.msra.mxu0 0.0
        %631 = vmatprep.subr.mxu0 0.0
        %632 = vmatpush1.msra.mxu0 0.0
        %633 = vmatprep.subr.mxu0 0.0
        %634 = vmatpush1.msra.mxu0 0.0
        %635 = vmatprep.subr.mxu0 0.0
        %636 = vmatpush1.msra.mxu0 0.0
        %637 = vmatprep.subr.mxu0 0.0
        %638 = vmatpush1.msra.mxu0 0.0
        %639 = vmatprep.subr.mxu0 0.0
        %640 = vmatpush1.msra.mxu0 0.0
        %641 = vmatprep.subr.mxu0 0.0
        %642 = vmatpush1.msra.mxu0 0.0
        %643 = vmatprep.subr.mxu0 0.0
        %644 = vmatpush1.msra.mxu0 0.0
        %645 = vmatprep.subr.mxu0 0.0
        %646 = vmatpush1.msra.mxu0 0.0
        %647 = vmatprep.subr.mxu0 0.0
        %648 = vmatpush1.msra.mxu0 0.0
        %649 = vmatprep.subr.mxu0 0.0
        %650 = vmatpush1.msra.mxu0 0.0
        %651 = vmatprep.subr.mxu0 0.0
        %652 = vmatpush1.msra.mxu0 0.0
        %653 = vmatprep.subr.mxu0 0.0
        %654 = vmatpush1.msra.mxu0 0.0
        %655 = vmatprep.subr.mxu0 0.0
        %656 = vmatpush1.msra.mxu0 0.0
        %657 = vmatprep.subr.mxu0 0.0
        %658 = vmatpush1.msra.mxu0 0.0
        %659 = vmatprep.subr.mxu0 0.0
        %660 = vmatpush1.msra.mxu0 0.0
        %661 = vmatprep.subr.mxu0 0.0
        %662 = vmatpush1.msra.mxu0 0.0
        %663 = vmatprep.subr.mxu0 0.0
        %664 = vmatpush1.msra.mxu0 0.0
        %665 = vmatprep.subr.mxu0 0.0
        %666 = vmatpush1.msra.mxu0 0.0
        %667 = vmatprep.subr.mxu0 0.0
        %668 = vmatpush1.msra.mxu0 0.0
        %669 = vmatprep.mubr.f32.mxu0 0.0
        %v670 = vand.u32 %v262, 4294901760
        %671 = vmatmul.mubr.f32.gmra.mrb[0].mxu0 %v670
        %v672 = vpop.f32.mrb[0].mxu0
        %v673 = vadd.f32 %v591, %v672
        %v674 = vpop.f32.mrb[0].mxu0
        %675 = vmatprep.mubr.f32.mxu0 0.0
        %v676 = vand.u32 %v265, 4294901760
        %677 = vmatmul.mubr.f32.gmra.mrb[0].mxu0 %v676
        %v678 = vpop.f32.mrb[0].mxu0
        %v679 = vadd.f32 %v599, %v678
        %v680 = vpop.f32.mrb[0].mxu0
        %681 = vdwg.mxu0
        %682 = vmatprep.subr.mxu0 0.0
        %v683 = vand.u32 %v269, 4294901760
        %684 = vmatpush1.msra.mxu0 %v683
        %685 = vmatprep.subr.mxu0 0.0
        %686 = vmatpush1.msra.mxu0 0.0
        %687 = vmatprep.subr.mxu0 0.0
        %688 = vmatpush1.msra.mxu0 0.0
        %689 = vmatprep.subr.mxu0 0.0
        %690 = vmatpush1.msra.mxu0 0.0
        %691 = vmatprep.subr.mxu0 0.0
        %692 = vmatpush1.msra.mxu0 0.0
        %693 = vmatprep.subr.mxu0 0.0
        %694 = vmatpush1.msra.mxu0 0.0
        %695 = vmatprep.subr.mxu0 0.0
        %696 = vmatpush1.msra.mxu0 0.0
        %697 = vmatprep.subr.mxu0 0.0
        %698 = vmatpush1.msra.mxu0 0.0
        %699 = vmatprep.subr.mxu0 0.0
        %700 = vmatpush1.msra.mxu0 0.0
        %701 = vmatprep.subr.mxu0 0.0
        %702 = vmatpush1.msra.mxu0 0.0
        %703 = vmatprep.subr.mxu0 0.0
        %704 = vmatpush1.msra.mxu0 0.0
        %705 = vmatprep.subr.mxu0 0.0
        %706 = vmatpush1.msra.mxu0 0.0
        %707 = vmatprep.subr.mxu0 0.0
        %708 = vmatpush1.msra.mxu0 0.0
        %709 = vmatprep.subr.mxu0 0.0
        %710 = vmatpush1.msra.mxu0 0.0
        %711 = vmatprep.subr.mxu0 0.0
        %712 = vmatpush1.msra.mxu0 0.0
        %713 = vmatprep.subr.mxu0 0.0
        %714 = vmatpush1.msra.mxu0 0.0
        %715 = vmatprep.subr.mxu0 0.0
        %716 = vmatpush1.msra.mxu0 0.0
        %717 = vmatprep.subr.mxu0 0.0
        %718 = vmatpush1.msra.mxu0 0.0
        %719 = vmatprep.subr.mxu0 0.0
        %720 = vmatpush1.msra.mxu0 0.0
        %721 = vmatprep.subr.mxu0 0.0
        %722 = vmatpush1.msra.mxu0 0.0
        %723 = vmatprep.subr.mxu0 0.0
        %724 = vmatpush1.msra.mxu0 0.0
        %725 = vmatprep.subr.mxu0 0.0
        %726 = vmatpush1.msra.mxu0 0.0
        %727 = vmatprep.subr.mxu0 0.0
        %728 = vmatpush1.msra.mxu0 0.0
        %729 = vmatprep.subr.mxu0 0.0
        %730 = vmatpush1.msra.mxu0 0.0
        %731 = vmatprep.subr.mxu0 0.0
        %732 = vmatpush1.msra.mxu0 0.0
        %733 = vmatprep.subr.mxu0 0.0
        %734 = vmatpush1.msra.mxu0 0.0
        %735 = vmatprep.subr.mxu0 0.0
        %736 = vmatpush1.msra.mxu0 0.0
        %737 = vmatprep.subr.mxu0 0.0
        %738 = vmatpush1.msra.mxu0 0.0
        %739 = vmatprep.subr.mxu0 0.0
        %740 = vmatpush1.msra.mxu0 0.0
        %741 = vmatprep.subr.mxu0 0.0
        %742 = vmatpush1.msra.mxu0 0.0
        %743 = vmatprep.subr.mxu0 0.0
        %744 = vmatpush1.msra.mxu0 0.0
        %745 = vmatprep.subr.mxu0 0.0
        %746 = vmatpush1.msra.mxu0 0.0
        %747 = vmatprep.mubr.f32.mxu0 0.0
        %v748 = vand.u32 %v262, 4294901760
        %749 = vmatmul.mubr.f32.gmra.mrb[0].mxu0 %v748
        %v750 = vpop.f32.mrb[0].mxu0
        %v751 = vadd.f32 %v673, %v750
        %v752 = vpop.f32.mrb[0].mxu0
        %753 = vmatprep.mubr.f32.mxu0 0.0
        %v754 = vand.u32 %v265, 4294901760
        %755 = vmatmul.mubr.f32.gmra.mrb[0].mxu0 %v754
        %v756 = vpop.f32.mrb[0].mxu0
        %v757 = vadd.f32 %v679, %v756
        %v758 = vpop.f32.mrb[0].mxu0
        %759 = vdwg.mxu0
        %v760 = vmul.f32 %v751, 0.5
        %v761 = vmul.f32 %v757, 0.5
        %v762 = vmul.f32 %v751, 0.70710677
        %v763 = vmul.f32 %v757, 0.70710677
        %v764 = verf.f32.pop %v762
        %v765 = verf.f32.pop %v763
        %v766 = vadd.f32 %v764, 1.0
        %v767 = vadd.f32 %v765, 1.0
        %v768 = vmul.f32 %v760, %v766
        %v769 = vmul.f32 %v761, %v767
        %v770 = vld [vmem:[%s3] sm:$0xf]
        %v771 = vld [vmem:[%s4] sm:$0xf]
        %773 = vset.pattern.permute.xlu0 0
        %774 = vperm.xlu0 %773, %v771
        %v775 = vpop.permute.xlu0 %774
        %vm777 = vcmask 130048
        %v779 = vsel %vm777, %v770, 0
        %781 = vmatprep.subr.mxu0 0.0
        %v782 = vand.u32 %v768, 4294901760
        %783 = vmatpush1.msra.mxu0 %v782
        %784 = vmatprep.subr.mxu0 0.0
        %v785 = vand.u32 %v769, 4294901760
        %786 = vmatpush1.msra.mxu0 %v785
        %787 = vmatprep.subr.mxu0 0.0
        %788 = vmatpush1.msra.mxu0 0.0
        %789 = vmatprep.subr.mxu0 0.0
        %790 = vmatpush1.msra.mxu0 0.0
        %791 = vmatprep.subr.mxu0 0.0
        %792 = vmatpush1.msra.mxu0 0.0
        %793 = vmatprep.subr.mxu0 0.0
        %794 = vmatpush1.msra.mxu0 0.0
        %795 = vmatprep.subr.mxu0 0.0
        %796 = vmatpush1.msra.mxu0 0.0
        %797 = vmatprep.subr.mxu0 0.0
        %798 = vmatpush1.msra.mxu0 0.0
        %799 = vmatprep.subr.mxu0 0.0
        %800 = vmatpush1.msra.mxu0 0.0
        %801 = vmatprep.subr.mxu0 0.0
        %802 = vmatpush1.msra.mxu0 0.0
        %803 = vmatprep.subr.mxu0 0.0
        %804 = vmatpush1.msra.mxu0 0.0
        %805 = vmatprep.subr.mxu0 0.0
        %806 = vmatpush1.msra.mxu0 0.0
        %807 = vmatprep.subr.mxu0 0.0
        %808 = vmatpush1.msra.mxu0 0.0
        %809 = vmatprep.subr.mxu0 0.0
        %810 = vmatpush1.msra.mxu0 0.0
        %811 = vmatprep.subr.mxu0 0.0
        %812 = vmatpush1.msra.mxu0 0.0
        %813 = vmatprep.subr.mxu0 0.0
        %814 = vmatpush1.msra.mxu0 0.0
        %815 = vmatprep.subr.mxu0 0.0
        %816 = vmatpush1.msra.mxu0 0.0
        %817 = vmatprep.subr.mxu0 0.0
        %818 = vmatpush1.msra.mxu0 0.0
        %819 = vmatprep.subr.mxu0 0.0
        %820 = vmatpush1.msra.mxu0 0.0
        %821 = vmatprep.subr.mxu0 0.0
        %822 = vmatpush1.msra.mxu0 0.0
        %823 = vmatprep.subr.mxu0 0.0
        %824 = vmatpush1.msra.mxu0 0.0
        %825 = vmatprep.subr.mxu0 0.0
        %826 = vmatpush1.msra.mxu0 0.0
        %827 = vmatprep.subr.mxu0 0.0
        %828 = vmatpush1.msra.mxu0 0.0
        %829 = vmatprep.subr.mxu0 0.0
        %830 = vmatpush1.msra.mxu0 0.0
        %831 = vmatprep.subr.mxu0 0.0
        %832 = vmatpush1.msra.mxu0 0.0
        %833 = vmatprep.subr.mxu0 0.0
        %834 = vmatpush1.msra.mxu0 0.0
        %835 = vmatprep.subr.mxu0 0.0
        %836 = vmatpush1.msra.mxu0 0.0
        %837 = vmatprep.subr.mxu0 0.0
        %838 = vmatpush1.msra.mxu0 0.0
        %839 = vmatprep.subr.mxu0 0.0
        %840 = vmatpush1.msra.mxu0 0.0
        %841 = vmatprep.subr.mxu0 0.0
        %842 = vmatpush1.msra.mxu0 0.0
        %843 = vmatprep.subr.mxu0 0.0
        %844 = vmatpush1.msra.mxu0 0.0
        %845 = vmatprep.subr.mxu0 0.0
        %846 = vmatpush1.msra.mxu0 0.0
        %847 = vmatprep.mubr.f32.mxu0 0.0
        %v848 = vand.u32 %v779, 4294901760
        %v849 = vsub.f32 %v779, %v848
        %v850 = vand.u32 %v849, 4294901760
        %v851 = vsub.f32 %v849, %v850
        %v852 = vand.u32 %v851, 4294901760
        %853 = vmatmul.mubr.f32.gmra.mrb[0].mxu0 %v852
        %v854 = vpop.f32.mrb[0].mxu0
        %v855 = vadd.f32 %v775, %v854
        %v856 = vpop.f32.mrb[0].mxu0
        %857 = vdwg.mxu0
        %858 = vmatprep.subr.mxu0 0.0
        %v859 = vand.u32 %v768, 4294901760
        %v860 = vsub.f32 %v768, %v859
        %v861 = vand.u32 %v860, 4294901760
        %v862 = vsub.f32 %v860, %v861
        %v863 = vand.u32 %v862, 4294901760
        %864 = vmatpush1.msra.mxu0 %v863
        %865 = vmatprep.subr.mxu0 0.0
        %v866 = vand.u32 %v769, 4294901760
        %v867 = vsub.f32 %v769, %v866
        %v868 = vand.u32 %v867, 4294901760
        %v869 = vsub.f32 %v867, %v868
        %v870 = vand.u32 %v869, 4294901760
        %871 = vmatpush1.msra.mxu0 %v870
        %872 = vmatprep.subr.mxu0 0.0
        %873 = vmatpush1.msra.mxu0 0.0
        %874 = vmatprep.subr.mxu0 0.0
        %875 = vmatpush1.msra.mxu0 0.0
        %876 = vmatprep.subr.mxu0 0.0
        %877 = vmatpush1.msra.mxu0 0.0
        %878 = vmatprep.subr.mxu0 0.0
        %879 = vmatpush1.msra.mxu0 0.0
        %880 = vmatprep.subr.mxu0 0.0
        %881 = vmatpush1.msra.mxu0 0.0
        %882 = vmatprep.subr.mxu0 0.0
        %883 = vmatpush1.msra.mxu0 0.0
        %884 = vmatprep.subr.mxu0 0.0
        %885 = vmatpush1.msra.mxu0 0.0
        %886 = vmatprep.subr.mxu0 0.0
        %887 = vmatpush1.msra.mxu0 0.0
        %888 = vmatprep.subr.mxu0 0.0
        %889 = vmatpush1.msra.mxu0 0.0
        %890 = vmatprep.subr.mxu0 0.0
        %891 = vmatpush1.msra.mxu0 0.0
        %892 = vmatprep.subr.mxu0 0.0
        %893 = vmatpush1.msra.mxu0 0.0
        %894 = vmatprep.subr.mxu0 0.0
        %895 = vmatpush1.msra.mxu0 0.0
        %896 = vmatprep.subr.mxu0 0.0
        %897 = vmatpush1.msra.mxu0 0.0
        %898 = vmatprep.subr.mxu0 0.0
        %899 = vmatpush1.msra.mxu0 0.0
        %900 = vmatprep.subr.mxu0 0.0
        %901 = vmatpush1.msra.mxu0 0.0
        %902 = vmatprep.subr.mxu0 0.0
        %903 = vmatpush1.msra.mxu0 0.0
        %904 = vmatprep.subr.mxu0 0.0
        %905 = vmatpush1.msra.mxu0 0.0
        %906 = vmatprep.subr.mxu0 0.0
        %907 = vmatpush1.msra.mxu0 0.0
        %908 = vmatprep.subr.mxu0 0.0
        %909 = vmatpush1.msra.mxu0 0.0
        %910 = vmatprep.subr.mxu0 0.0
        %911 = vmatpush1.msra.mxu0 0.0
        %912 = vmatprep.subr.mxu0 0.0
        %913 = vmatpush1.msra.mxu0 0.0
        %914 = vmatprep.subr.mxu0 0.0
        %915 = vmatpush1.msra.mxu0 0.0
        %916 = vmatprep.subr.mxu0 0.0
        %917 = vmatpush1.msra.mxu0 0.0
        %918 = vmatprep.subr.mxu0 0.0
        %919 = vmatpush1.msra.mxu0 0.0
        %920 = vmatprep.subr.mxu0 0.0
        %921 = vmatpush1.msra.mxu0 0.0
        %922 = vmatprep.subr.mxu0 0.0
        %923 = vmatpush1.msra.mxu0 0.0
        %924 = vmatprep.subr.mxu0 0.0
        %925 = vmatpush1.msra.mxu0 0.0
        %926 = vmatprep.subr.mxu0 0.0
        %927 = vmatpush1.msra.mxu0 0.0
        %928 = vmatprep.subr.mxu0 0.0
        %929 = vmatpush1.msra.mxu0 0.0
        %930 = vmatprep.subr.mxu0 0.0
        %931 = vmatpush1.msra.mxu0 0.0
        %932 = vmatprep.mubr.f32.mxu0 0.0
        %v933 = vand.u32 %v779, 4294901760
        %934 = vmatmul.mubr.f32.gmra.mrb[0].mxu0 %v933
        %v935 = vpop.f32.mrb[0].mxu0
        %v936 = vadd.f32 %v855, %v935
        %v937 = vpop.f32.mrb[0].mxu0
        %938 = vdwg.mxu0
        %939 = vmatprep.subr.mxu0 0.0
        %v940 = vand.u32 %v768, 4294901760
        %v941 = vsub.f32 %v768, %v940
        %942 = vmatpush1.msra.mxu0 %v941
        %943 = vmatprep.subr.mxu0 0.0
        %v944 = vand.u32 %v769, 4294901760
        %v945 = vsub.f32 %v769, %v944
        %946 = vmatpush1.msra.mxu0 %v945
        %947 = vmatprep.subr.mxu0 0.0
        %948 = vmatpush1.msra.mxu0 0.0
        %949 = vmatprep.subr.mxu0 0.0
        %950 = vmatpush1.msra.mxu0 0.0
        %951 = vmatprep.subr.mxu0 0.0
        %952 = vmatpush1.msra.mxu0 0.0
        %953 = vmatprep.subr.mxu0 0.0
        %954 = vmatpush1.msra.mxu0 0.0
        %955 = vmatprep.subr.mxu0 0.0
        %956 = vmatpush1.msra.mxu0 0.0
        %957 = vmatprep.subr.mxu0 0.0
        %958 = vmatpush1.msra.mxu0 0.0
        %959 = vmatprep.subr.mxu0 0.0
        %960 = vmatpush1.msra.mxu0 0.0
        %961 = vmatprep.subr.mxu0 0.0
        %962 = vmatpush1.msra.mxu0 0.0
        %963 = vmatprep.subr.mxu0 0.0
        %964 = vmatpush1.msra.mxu0 0.0
        %965 = vmatprep.subr.mxu0 0.0
        %966 = vmatpush1.msra.mxu0 0.0
        %967 = vmatprep.subr.mxu0 0.0
        %968 = vmatpush1.msra.mxu0 0.0
        %969 = vmatprep.subr.mxu0 0.0
        %970 = vmatpush1.msra.mxu0 0.0
        %971 = vmatprep.subr.mxu0 0.0
        %972 = vmatpush1.msra.mxu0 0.0
        %973 = vmatprep.subr.mxu0 0.0
        %974 = vmatpush1.msra.mxu0 0.0
        %975 = vmatprep.subr.mxu0 0.0
        %976 = vmatpush1.msra.mxu0 0.0
        %977 = vmatprep.subr.mxu0 0.0
        %978 = vmatpush1.msra.mxu0 0.0
        %979 = vmatprep.subr.mxu0 0.0
        %980 = vmatpush1.msra.mxu0 0.0
        %981 = vmatprep.subr.mxu0 0.0
        %982 = vmatpush1.msra.mxu0 0.0
        %983 = vmatprep.subr.mxu0 0.0
        %984 = vmatpush1.msra.mxu0 0.0
        %985 = vmatprep.subr.mxu0 0.0
        %986 = vmatpush1.msra.mxu0 0.0
        %987 = vmatprep.subr.mxu0 0.0
        %988 = vmatpush1.msra.mxu0 0.0
        %989 = vmatprep.subr.mxu0 0.0
        %990 = vmatpush1.msra.mxu0 0.0
        %991 = vmatprep.subr.mxu0 0.0
        %992 = vmatpush1.msra.mxu0 0.0
        %993 = vmatprep.subr.mxu0 0.0
        %994 = vmatpush1.msra.mxu0 0.0
        %995 = vmatprep.subr.mxu0 0.0
        %996 = vmatpush1.msra.mxu0 0.0
        %997 = vmatprep.subr.mxu0 0.0
        %998 = vmatpush1.msra.mxu0 0.0
        %999 = vmatprep.subr.mxu0 0.0
        %1000 = vmatpush1.msra.mxu0 0.0
        %1001 = vmatprep.subr.mxu0 0.0
        %1002 = vmatpush1.msra.mxu0 0.0
        %1003 = vmatprep.subr.mxu0 0.0
        %1004 = vmatpush1.msra.mxu0 0.0
        %1005 = vmatprep.subr.mxu0 0.0
        %1006 = vmatpush1.msra.mxu0 0.0
        %1007 = vmatprep.mubr.f32.mxu0 0.0
        %v1008 = vand.u32 %v779, 4294901760
        %v1009 = vsub.f32 %v779, %v1008
        %1010 = vmatmul.mubr.f32.gmra.mrb[0].mxu0 %v1009
        %v1011 = vpop.f32.mrb[0].mxu0
        %v1012 = vadd.f32 %v936, %v1011
        %v1013 = vpop.f32.mrb[0].mxu0
        %1014 = vdwg.mxu0
        %1015 = vmatprep.subr.mxu0 0.0
        %v1016 = vand.u32 %v768, 4294901760
        %1017 = vmatpush1.msra.mxu0 %v1016
        %1018 = vmatprep.subr.mxu0 0.0
        %v1019 = vand.u32 %v769, 4294901760
        %1020 = vmatpush1.msra.mxu0 %v1019
        %1021 = vmatprep.subr.mxu0 0.0
        %1022 = vmatpush1.msra.mxu0 0.0
        %1023 = vmatprep.subr.mxu0 0.0
        %1024 = vmatpush1.msra.mxu0 0.0
        %1025 = vmatprep.subr.mxu0 0.0
        %1026 = vmatpush1.msra.mxu0 0.0
        %1027 = vmatprep.subr.mxu0 0.0
        %1028 = vmatpush1.msra.mxu0 0.0
        %1029 = vmatprep.subr.mxu0 0.0
        %1030 = vmatpush1.msra.mxu0 0.0
        %1031 = vmatprep.subr.mxu0 0.0
        %1032 = vmatpush1.msra.mxu0 0.0
        %1033 = vmatprep.subr.mxu0 0.0
        %1034 = vmatpush1.msra.mxu0 0.0
        %1035 = vmatprep.subr.mxu0 0.0
        %1036 = vmatpush1.msra.mxu0 0.0
        %1037 = vmatprep.subr.mxu0 0.0
        %1038 = vmatpush1.msra.mxu0 0.0
        %1039 = vmatprep.subr.mxu0 0.0
        %1040 = vmatpush1.msra.mxu0 0.0
        %1041 = vmatprep.subr.mxu0 0.0
        %1042 = vmatpush1.msra.mxu0 0.0
        %1043 = vmatprep.subr.mxu0 0.0
        %1044 = vmatpush1.msra.mxu0 0.0
        %1045 = vmatprep.subr.mxu0 0.0
        %1046 = vmatpush1.msra.mxu0 0.0
        %1047 = vmatprep.subr.mxu0 0.0
        %1048 = vmatpush1.msra.mxu0 0.0
        %1049 = vmatprep.subr.mxu0 0.0
        %1050 = vmatpush1.msra.mxu0 0.0
        %1051 = vmatprep.subr.mxu0 0.0
        %1052 = vmatpush1.msra.mxu0 0.0
        %1053 = vmatprep.subr.mxu0 0.0
        %1054 = vmatpush1.msra.mxu0 0.0
        %1055 = vmatprep.subr.mxu0 0.0
        %1056 = vmatpush1.msra.mxu0 0.0
        %1057 = vmatprep.subr.mxu0 0.0
        %1058 = vmatpush1.msra.mxu0 0.0
        %1059 = vmatprep.subr.mxu0 0.0
        %1060 = vmatpush1.msra.mxu0 0.0
        %1061 = vmatprep.subr.mxu0 0.0
        %1062 = vmatpush1.msra.mxu0 0.0
        %1063 = vmatprep.subr.mxu0 0.0
        %1064 = vmatpush1.msra.mxu0 0.0
        %1065 = vmatprep.subr.mxu0 0.0
        %1066 = vmatpush1.msra.mxu0 0.0
        %1067 = vmatprep.subr.mxu0 0.0
        %1068 = vmatpush1.msra.mxu0 0.0
        %1069 = vmatprep.subr.mxu0 0.0
        %1070 = vmatpush1.msra.mxu0 0.0
        %1071 = vmatprep.subr.mxu0 0.0
        %1072 = vmatpush1.msra.mxu0 0.0
        %1073 = vmatprep.subr.mxu0 0.0
        %1074 = vmatpush1.msra.mxu0 0.0
        %1075 = vmatprep.subr.mxu0 0.0
        %1076 = vmatpush1.msra.mxu0 0.0
        %1077 = vmatprep.subr.mxu0 0.0
        %1078 = vmatpush1.msra.mxu0 0.0
        %1079 = vmatprep.subr.mxu0 0.0
        %1080 = vmatpush1.msra.mxu0 0.0
        %1081 = vmatprep.mubr.f32.mxu0 0.0
        %v1082 = vand.u32 %v779, 4294901760
        %v1083 = vsub.f32 %v779, %v1082
        %v1084 = vand.u32 %v1083, 4294901760
        %1085 = vmatmul.mubr.f32.gmra.mrb[0].mxu0 %v1084
        %v1086 = vpop.f32.mrb[0].mxu0
        %v1087 = vadd.f32 %v1012, %v1086
        %v1088 = vpop.f32.mrb[0].mxu0
        %1089 = vdwg.mxu0
        %1090 = vmatprep.subr.mxu0 0.0
        %v1091 = vand.u32 %v768, 4294901760
        %v1092 = vsub.f32 %v768, %v1091
        %v1093 = vand.u32 %v1092, 4294901760
        %1094 = vmatpush1.msra.mxu0 %v1093
        %1095 = vmatprep.subr.mxu0 0.0
        %v1096 = vand.u32 %v769, 4294901760
        %v1097 = vsub.f32 %v769, %v1096
        %v1098 = vand.u32 %v1097, 4294901760
        %1099 = vmatpush1.msra.mxu0 %v1098
        %1100 = vmatprep.subr.mxu0 0.0
        %1101 = vmatpush1.msra.mxu0 0.0
        %1102 = vmatprep.subr.mxu0 0.0
        %1103 = vmatpush1.msra.mxu0 0.0
        %1104 = vmatprep.subr.mxu0 0.0
        %1105 = vmatpush1.msra.mxu0 0.0
        %1106 = vmatprep.subr.mxu0 0.0
        %1107 = vmatpush1.msra.mxu0 0.0
        %1108 = vmatprep.subr.mxu0 0.0
        %1109 = vmatpush1.msra.mxu0 0.0
        %1110 = vmatprep.subr.mxu0 0.0
        %1111 = vmatpush1.msra.mxu0 0.0
        %1112 = vmatprep.subr.mxu0 0.0
        %1113 = vmatpush1.msra.mxu0 0.0
        %1114 = vmatprep.subr.mxu0 0.0
        %1115 = vmatpush1.msra.mxu0 0.0
        %1116 = vmatprep.subr.mxu0 0.0
        %1117 = vmatpush1.msra.mxu0 0.0
        %1118 = vmatprep.subr.mxu0 0.0
        %1119 = vmatpush1.msra.mxu0 0.0
        %1120 = vmatprep.subr.mxu0 0.0
        %1121 = vmatpush1.msra.mxu0 0.0
        %1122 = vmatprep.subr.mxu0 0.0
        %1123 = vmatpush1.msra.mxu0 0.0
        %1124 = vmatprep.subr.mxu0 0.0
        %1125 = vmatpush1.msra.mxu0 0.0
        %1126 = vmatprep.subr.mxu0 0.0
        %1127 = vmatpush1.msra.mxu0 0.0
        %1128 = vmatprep.subr.mxu0 0.0
        %1129 = vmatpush1.msra.mxu0 0.0
        %1130 = vmatprep.subr.mxu0 0.0
        %1131 = vmatpush1.msra.mxu0 0.0
        %1132 = vmatprep.subr.mxu0 0.0
        %1133 = vmatpush1.msra.mxu0 0.0
        %1134 = vmatprep.subr.mxu0 0.0
        %1135 = vmatpush1.msra.mxu0 0.0
        %1136 = vmatprep.subr.mxu0 0.0
        %1137 = vmatpush1.msra.mxu0 0.0
        %1138 = vmatprep.subr.mxu0 0.0
        %1139 = vmatpush1.msra.mxu0 0.0
        %1140 = vmatprep.subr.mxu0 0.0
        %1141 = vmatpush1.msra.mxu0 0.0
        %1142 = vmatprep.subr.mxu0 0.0
        %1143 = vmatpush1.msra.mxu0 0.0
        %1144 = vmatprep.subr.mxu0 0.0
        %1145 = vmatpush1.msra.mxu0 0.0
        %1146 = vmatprep.subr.mxu0 0.0
        %1147 = vmatpush1.msra.mxu0 0.0
        %1148 = vmatprep.subr.mxu0 0.0
        %1149 = vmatpush1.msra.mxu0 0.0
        %1150 = vmatprep.subr.mxu0 0.0
        %1151 = vmatpush1.msra.mxu0 0.0
        %1152 = vmatprep.subr.mxu0 0.0
        %1153 = vmatpush1.msra.mxu0 0.0
        %1154 = vmatprep.subr.mxu0 0.0
        %1155 = vmatpush1.msra.mxu0 0.0
        %1156 = vmatprep.subr.mxu0 0.0
        %1157 = vmatpush1.msra.mxu0 0.0
        %1158 = vmatprep.subr.mxu0 0.0
        %1159 = vmatpush1.msra.mxu0 0.0
        %1160 = vmatprep.mubr.f32.mxu0 0.0
        %v1161 = vand.u32 %v779, 4294901760
        %1162 = vmatmul.mubr.f32.gmra.mrb[0].mxu0 %v1161
        %v1163 = vpop.f32.mrb[0].mxu0
        %v1164 = vadd.f32 %v1087, %v1163
        %v1165 = vpop.f32.mrb[0].mxu0
        %1166 = vdwg.mxu0
        %1167 = vmatprep.subr.mxu0 0.0
        %v1168 = vand.u32 %v768, 4294901760
        %1169 = vmatpush1.msra.mxu0 %v1168
        %1170 = vmatprep.subr.mxu0 0.0
        %v1171 = vand.u32 %v769, 4294901760
        %1172 = vmatpush1.msra.mxu0 %v1171
        %1173 = vmatprep.subr.mxu0 0.0
        %1174 = vmatpush1.msra.mxu0 0.0
        %1175 = vmatprep.subr.mxu0 0.0
        %1176 = vmatpush1.msra.mxu0 0.0
        %1177 = vmatprep.subr.mxu0 0.0
        %1178 = vmatpush1.msra.mxu0 0.0
        %1179 = vmatprep.subr.mxu0 0.0
        %1180 = vmatpush1.msra.mxu0 0.0
        %1181 = vmatprep.subr.mxu0 0.0
        %1182 = vmatpush1.msra.mxu0 0.0
        %1183 = vmatprep.subr.mxu0 0.0
        %1184 = vmatpush1.msra.mxu0 0.0
        %1185 = vmatprep.subr.mxu0 0.0
        %1186 = vmatpush1.msra.mxu0 0.0
        %1187 = vmatprep.subr.mxu0 0.0
        %1188 = vmatpush1.msra.mxu0 0.0
        %1189 = vmatprep.subr.mxu0 0.0
        %1190 = vmatpush1.msra.mxu0 0.0
        %1191 = vmatprep.subr.mxu0 0.0
        %1192 = vmatpush1.msra.mxu0 0.0
        %1193 = vmatprep.subr.mxu0 0.0
        %1194 = vmatpush1.msra.mxu0 0.0
        %1195 = vmatprep.subr.mxu0 0.0
        %1196 = vmatpush1.msra.mxu0 0.0
        %1197 = vmatprep.subr.mxu0 0.0
        %1198 = vmatpush1.msra.mxu0 0.0
        %1199 = vmatprep.subr.mxu0 0.0
        %1200 = vmatpush1.msra.mxu0 0.0
        %1201 = vmatprep.subr.mxu0 0.0
        %1202 = vmatpush1.msra.mxu0 0.0
        %1203 = vmatprep.subr.mxu0 0.0
        %1204 = vmatpush1.msra.mxu0 0.0
        %1205 = vmatprep.subr.mxu0 0.0
        %1206 = vmatpush1.msra.mxu0 0.0
        %1207 = vmatprep.subr.mxu0 0.0
        %1208 = vmatpush1.msra.mxu0 0.0
        %1209 = vmatprep.subr.mxu0 0.0
        %1210 = vmatpush1.msra.mxu0 0.0
        %1211 = vmatprep.subr.mxu0 0.0
        %1212 = vmatpush1.msra.mxu0 0.0
        %1213 = vmatprep.subr.mxu0 0.0
        %1214 = vmatpush1.msra.mxu0 0.0
        %1215 = vmatprep.subr.mxu0 0.0
        %1216 = vmatpush1.msra.mxu0 0.0
        %1217 = vmatprep.subr.mxu0 0.0
        %1218 = vmatpush1.msra.mxu0 0.0
        %1219 = vmatprep.subr.mxu0 0.0
        %1220 = vmatpush1.msra.mxu0 0.0
        %1221 = vmatprep.subr.mxu0 0.0
        %1222 = vmatpush1.msra.mxu0 0.0
        %1223 = vmatprep.subr.mxu0 0.0
        %1224 = vmatpush1.msra.mxu0 0.0
        %1225 = vmatprep.subr.mxu0 0.0
        %1226 = vmatpush1.msra.mxu0 0.0
        %1227 = vmatprep.subr.mxu0 0.0
        %1228 = vmatpush1.msra.mxu0 0.0
        %1229 = vmatprep.subr.mxu0 0.0
        %1230 = vmatpush1.msra.mxu0 0.0
        %1231 = vmatprep.subr.mxu0 0.0
        %1232 = vmatpush1.msra.mxu0 0.0
        %1233 = vmatprep.mubr.f32.mxu0 0.0
        %v1234 = vand.u32 %v779, 4294901760
        %1235 = vmatmul.mubr.f32.gmra.mrb[0].mxu0 %v1234
        %v1236 = vpop.f32.mrb[0].mxu0
        %v1237 = vadd.f32 %v1164, %v1236
        %v1238 = vpop.f32.mrb[0].mxu0
        %1239 = vdwg.mxu0
        %1240 = vst [vmem:[%s237] sm:$0xf] %v1237
        %s1241 = sand.u32 %s153, 1
        %s1242 = scalar_lea.sflag [#allocation3], %s1241
        %s1243 = sand.u32 %s153, 1
        %s1244 = smul.addr %s1243, 4
        %s1245 = scalar_lea.vmem [#allocation2], %s1244
        // Predicated region
        $region41: #{tpu_custom_call.1} parent=39 // pred_check
          %p1246 = pneg %p163
        $region42: #{tpu_custom_call.1} parent=39 // pred_check_branch
          %1248 = sbr.rel (%p1246) target = $region44
        $region43: #{tpu_custom_call.1} parent=39 // pred_region
          %s1250 = ssub.s32 64, 64
          %1251 = vsyncadd %s1242, %s1250
          %s1252 = sadd.s32 %s24, %s23
          %s1253 = smul.addr %s1252, 64
          %s1254 = scalar_lea.hbm %s5, %s1253
          %s1256 = sshll.u32 %s1245, 4
          %s1257 = int_to_ptr.vmem [resolvable:$true] %s1256
          %1259 = dma.vmem_to_hbm [thread:$0]  %s1257, 64, %s1254, %s1242
        $region44: #{tpu_custom_call.1} parent=39 // pred_fallthru
          _
      $region40: #{tpu_custom_call.1} parent=5 // pred_fallthru
        _
      %p1260 = scmp.le.s32.totalorder 2, %s14
      // Predicated region
      $region45: #{tpu_custom_call.1} parent=5 // pred_check
        %p1261 = pneg %p1260
      $region46: #{tpu_custom_call.1} parent=5 // pred_check_branch
        %1263 = sbr.rel (%p1261) target = $region48
      $region47: #{tpu_custom_call.1} parent=5 // pred_region
        %s1264 = ssub.s32 %s14, 2
        // Predicated region
        $region49: #{tpu_custom_call.1} parent=47 // pred_check
          %p1265 = pneg %p169
        $region50: #{tpu_custom_call.1} parent=47 // pred_check_branch
          %1267 = sbr.rel (%p1265) target = $region52
        $region51: #{tpu_custom_call.1} parent=47 // pred_region
          %s1268 = sand.u32 %s154, 1
          %s1269 = scalar_lea.sflag [#allocation3], %s1268
          %s1270 = sand.u32 %s154, 1
          %s1271 = smul.addr %s1270, 4
          %s1272 = scalar_lea.vmem [#allocation2], %s1271
          %1273 = dma.done %s1269, 64
        $region52: #{tpu_custom_call.1} parent=47 // pred_fallthru
          _
      $region48: #{tpu_custom_call.1} parent=5 // pred_fallthru
        _
    $region6: #{tpu_custom_call.1} parent=1 // loop_footer
      %s18 = sadd.s32 1, %s14
    $region7: #{tpu_custom_call.1} parent=1 // loop_footer_branch
      %13 = sbr.rel target = $region3
    $region8: #{tpu_custom_call.1} parent=1 // loop_exit
      _
    %1274 = vsyncpa [#allocation3], 1
    %s1275 = scalar_lea.sflag [#allocation3], 1
    %1276 = vsyncpa %s1275, 1

// kernel: tpu_custom_call.1
$region0: #{tpu_custom_call.1}
  #allocation0 [shape = 'u32[]', space=smem, size = 0x4, offset = 0x4, fixed_abs, tag = 'smem constant byte address 0x4 - core index']
  #allocation1 [shape = 'u32[144,128]{1,0:T(1,128)}', space=vmem, size = 0x12000, scoped, tag = 'internal scratch']
  %s0 = inlined_call_operand.vmem [shape: f32[2,4,128], index: 0, kind: input, shape index: {}]
  %s1 = inlined_call_operand.vmem [shape: f32[16,4], index: 1, kind: input, shape index: {}]
  %s2 = inlined_call_operand.vmem [shape: f32[16,1], index: 2, kind: input, shape index: {}]
  %s3 = inlined_call_operand.vmem [shape: f32[4,16], index: 3, kind: input, shape index: {}]
  %s4 = inlined_call_operand.vmem [shape: f32[4,1], index: 4, kind: input, shape index: {}]
  %s5 = inlined_call_operand.hbm [shape: f32[2,4,128], index: 5, kind: output, shape index: {}]
  %s6 = sld [smem:[#allocation0]]
  $region53: #{tpu_custom_call.1} parent=0
    _
  %s8 = ssub.s32 1, %s6
  %s9 = scalar_select 0, %s8, %s6
  $region1: #{tpu_custom_call.1} parent=0
    #allocation2 [shape = 'u8[4096]{0}', space=vmem, size = 0x1000, scoped, tag = 'output window, operand 0']
    #allocation3 [shape = 's32[2]{0}', space=sflag, size = 0x8, scoped, tag = 'scoped memory for tpu_custom_call.1']
    %10 = vsyncpa [#allocation3], 0
    %s11 = scalar_lea.sflag [#allocation3], 1
    %12 = vsyncpa %s11, 0
    loop: start=0, step=1, limit=4
    $region2: #{tpu_custom_call.1} parent=1 // loop_pre_header
      _
    $region3: #{tpu_custom_call.1} parent=1 // loop_header
      %s14 = sphi 0, %s18
      %p15 = scmp.ge.s32.totalorder %s14, 4
      %s21 = sphi 0, %s33
      %s22 = sphi 0, %s29
      %s23 = sphi 0, %s21
      %s24 = sphi 0, %s22
      %s25 = sphi 0, %s23
      %s26 = sphi 0, %s24
      %s38 = sphi 0, %s40
      %s41 = sphi 0, %s38
      %s42 = sphi 0, %s41
      %s58 = sphi 0, %s42
      %s62 = sphi 0, %s62
      %s64 = sphi 0, %s62
      %s65 = sphi 0, %s64
      %s79 = sphi 0, %s65
      %s83 = sphi 0, %s83
      %s85 = sphi 0, %s83
      %s86 = sphi 0, %s85
      %s100 = sphi 0, %s86
      %s104 = sphi 0, %s104
      %s106 = sphi 0, %s104
      %s107 = sphi 0, %s106
      %s121 = sphi 0, %s107
      %s125 = sphi 0, %s125
      %s127 = sphi 0, %s125
      %s128 = sphi 0, %s127
      %s142 = sphi 0, %s128
      %s150 = sphi 0, %s152
      %s153 = sphi 0, %s150
      %s154 = sphi 0, %s153
      %s170 = sphi 0, %s154
    $region4: #{tpu_custom_call.1} parent=1 // loop_header_branch
      %17 = sbr.rel (%p15) target = $region8
    $region5: #{tpu_custom_call.1} parent=1 // loop_body
      %s19 = ssub.s32 %s14, 1
      %s20 = ssub.s32 %s14, 2
      %s27 = sadd.s32 1, %s22
      %p28 = scmp.ge.s32.totalorder %s27, 1
      %s29 = scalar_select %p28, 0, %s27
      %s30 = sadd.s32 1, %s21
      %s31 = scalar_select %p28, %s30, %s21
      %p32 = scmp.ge.s32.totalorder %s31, 2
      %s33 = scalar_select %p32, 0, %s31
      %s34 = ssub.s32 %s21, %s33
      %s35 = ssub.s32 %s22, %s29
      %s36 = sor.u32 %s34, %s35
      %p37 = scmp.eq.s32.totalorder %s36, 0
      %s39 = sadd.s32 %s38, 1
      %s40 = scalar_select %p37, %s38, %s39
      %p43 = pneg %p37
      %p44 = scmp.eq.s32.totalorder %s14, 1
      %p45 = por %p43, %p44
      %p46 = scmp.ne.s32.totalorder %s38, %s41
      %p47 = scmp.eq.s32.totalorder %s14, 0
      %p48 = por %p46, %p47
      %p49 = scmp.ne.s32.totalorder %s38, %s41
      %p50 = scmp.eq.s32.totalorder %s19, 1
      %p51 = por %p49, %p50
      %p52 = scmp.ne.s32.totalorder %s41, %s42
      %p53 = scmp.eq.s32.totalorder %s19, 0
      %p54 = por %p52, %p53
      %p55 = scmp.ne.s32.totalorder %s41, %s42
      %p56 = scmp.eq.s32.totalorder %s20, 1
      %p57 = por %p55, %p56
      %p59 = scmp.ne.s32.totalorder %s42, %s58
      %p60 = scmp.eq.s32.totalorder %s20, 0
      %p61 = por %p59, %p60
      %s63 = sadd.s32 %s62, 1
      %p66 = scmp.eq.s32.totalorder %s14, 1
      %p67 = scmp.ne.s32.totalorder %s62, %s64
      %p68 = scmp.eq.s32.totalorder %s14, 0
      %p69 = por %p67, %p68
      %p70 = scmp.ne.s32.totalorder %s62, %s64
      %p71 = scmp.eq.s32.totalorder %s19, 1
      %p72 = por %p70, %p71
      %p73 = scmp.ne.s32.totalorder %s64, %s65
      %p74 = scmp.eq.s32.totalorder %s19, 0
      %p75 = por %p73, %p74
      %p76 = scmp.ne.s32.totalorder %s64, %s65
      %p77 = scmp.eq.s32.totalorder %s20, 1
      %p78 = por %p76, %p77
      %p80 = scmp.ne.s32.totalorder %s65, %s79
      %p81 = scmp.eq.s32.totalorder %s20, 0
      %p82 = por %p80, %p81
      %s84 = sadd.s32 %s83, 1
      %p87 = scmp.eq.s32.totalorder %s14, 1
      %p88 = scmp.ne.s32.totalorder %s83, %s85
      %p89 = scmp.eq.s32.totalorder %s14, 0
      %p90 = por %p88, %p89
      %p91 = scmp.ne.s32.totalorder %s83, %s85
      %p92 = scmp.eq.s32.totalorder %s19, 1
      %p93 = por %p91, %p92
      %p94 = scmp.ne.s32.totalorder %s85, %s86
      %p95 = scmp.eq.s32.totalorder %s19, 0
      %p96 = por %p94, %p95
      %p97 = scmp.ne.s32.totalorder %s85, %s86
      %p98 = scmp.eq.s32.totalorder %s20, 1
      %p99 = por %p97, %p98
      %p101 = scmp.ne.s32.totalorder %s86, %s100
      %p102 = scmp.eq.s32.totalorder %s20, 0
      %p103 = por %p101, %p102
      %s105 = sadd.s32 %s104, 1
      %p108 = scmp.eq.s32.totalorder %s14, 1
      %p109 = scmp.ne.s32.totalorder %s104, %s106
      %p110 = scmp.eq.s32.totalorder %s14, 0
      %p111 = por %p109, %p110
      %p112 = scmp.ne.s32.totalorder %s104, %s106
      %p113 = scmp.eq.s32.totalorder %s19, 1
      %p114 = por %p112, %p113
      %p115 = scmp.ne.s32.totalorder %s106, %s107
      %p116 = scmp.eq.s32.totalorder %s19, 0
      %p117 = por %p115, %p116
      %p118 = scmp.ne.s32.totalorder %s106, %s107
      %p119 = scmp.eq.s32.totalorder %s20, 1
      %p120 = por %p118, %p119
      %p122 = scmp.ne.s32.totalorder %s107, %s121
      %p123 = scmp.eq.s32.totalorder %s20, 0
      %p124 = por %p122, %p123
      %s126 = sadd.s32 %s125, 1
      %p129 = scmp.eq.s32.totalorder %s14, 1
      %p130 = scmp.ne.s32.totalorder %s125, %s127
      %p131 = scmp.eq.s32.totalorder %s14, 0
      %p132 = por %p130, %p131
      %p133 = scmp.ne.s32.totalorder %s125, %s127
      %p134 = scmp.eq.s32.totalorder %s19, 1
      %p135 = por %p133, %p134
      %p136 = scmp.ne.s32.totalorder %s127, %s128
      %p137 = scmp.eq.s32.totalorder %s19, 0
      %p138 = por %p136, %p137
      %p139 = scmp.ne.s32.totalorder %s127, %s128
      %p140 = scmp.eq.s32.totalorder %s20, 1
      %p141 = por %p139, %p140
      %p143 = scmp.ne.s32.totalorder %s128, %s142
      %p144 = scmp.eq.s32.totalorder %s20, 0
      %p145 = por %p143, %p144
      %s146 = ssub.s32 %s21, %s33
      %s147 = ssub.s32 %s22, %s29
      %s148 = sor.u32 %s146, %s147
      %p149 = scmp.eq.s32.totalorder %s148, 0
      %s151 = sadd.s32 %s150, 1
      %s152 = scalar_select %p149, %s150, %s151
      %p155 = pneg %p149
      %p156 = scmp.eq.s32.totalorder %s14, 1
      %p157 = por %p155, %p156
      %p158 = scmp.ne.s32.totalorder %s150, %s153
      %p159 = scmp.eq.s32.totalorder %s14, 0
      %p160 = por %p158, %p159
      %p161 = scmp.ne.s32.totalorder %s150, %s153
      %p162 = scmp.eq.s32.totalorder %s19, 1
      %p163 = por %p161, %p162
      %p164 = scmp.ne.s32.totalorder %s153, %s154
      %p165 = scmp.eq.s32.totalorder %s19, 0
      %p166 = por %p164, %p165
      %p167 = scmp.ne.s32.totalorder %s153, %s154
      %p168 = scmp.eq.s32.totalorder %s20, 1
      %p169 = por %p167, %p168
      %p171 = scmp.ne.s32.totalorder %s154, %s170
      %p172 = scmp.eq.s32.totalorder %s20, 0
      %p173 = por %p171, %p172
      %p174 = scmp.le.s32.totalorder 1, %s14
      %p175 = scmp.lt.s32.totalorder %s14, 3
      %p176 = pnand %p174, %p175
      %p177 = pneg %p176
      // Predicated region
      $region9: #{tpu_custom_call.1} parent=5 // pred_check
        _
      $region10: #{tpu_custom_call.1} parent=5 // pred_check_branch
        %179 = sbr.rel (%p176) target = $region12
      $region11: #{tpu_custom_call.1} parent=5 // pred_region
        %s180 = ssub.s32 %s14, 1
        // Predicated region
        $region13: #{tpu_custom_call.1} parent=11 // pred_check
          %p181 = pneg %p75
        $region14: #{tpu_custom_call.1} parent=11 // pred_check_branch
          %183 = sbr.rel (%p181) target = $region16
        $region15: #{tpu_custom_call.1} parent=11 // pred_region
          _
        $region16: #{tpu_custom_call.1} parent=11 // pred_fallthru
          _
        // Predicated region
        $region17: #{tpu_custom_call.1} parent=11 // pred_check
          %p184 = pneg %p96
        $region18: #{tpu_custom_call.1} parent=11 // pred_check_branch
          %186 = sbr.rel (%p184) target = $region20
        $region19: #{tpu_custom_call.1} parent=11 // pred_region
          _
        $region20: #{tpu_custom_call.1} parent=11 // pred_fallthru
          _
        // Predicated region
        $region21: #{tpu_custom_call.1} parent=11 // pred_check
          %p187 = pneg %p117
        $region22: #{tpu_custom_call.1} parent=11 // pred_check_branch
          %189 = sbr.rel (%p187) target = $region24
        $region23: #{tpu_custom_call.1} parent=11 // pred_region
          _
        $region24: #{tpu_custom_call.1} parent=11 // pred_fallthru
          _
        // Predicated region
        $region25: #{tpu_custom_call.1} parent=11 // pred_check
          %p190 = pneg %p138
        $region26: #{tpu_custom_call.1} parent=11 // pred_check_branch
          %192 = sbr.rel (%p190) target = $region28
        $region27: #{tpu_custom_call.1} parent=11 // pred_region
          _
        $region28: #{tpu_custom_call.1} parent=11 // pred_fallthru
          _
      $region12: #{tpu_custom_call.1} parent=5 // pred_fallthru
        _
      %p193 = scmp.lt.s32.totalorder %s14, 2
      // Predicated region
      $region29: #{tpu_custom_call.1} parent=5 // pred_check
        %p194 = pneg %p193
      $region30: #{tpu_custom_call.1} parent=5 // pred_check_branch
        %196 = sbr.rel (%p194) target = $region32
      $region31: #{tpu_custom_call.1} parent=5 // pred_region
        // Predicated region
        $region33: #{tpu_custom_call.1} parent=31 // pred_check
          %p197 = pneg %p48
        $region34: #{tpu_custom_call.1} parent=31 // pred_check_branch
          %199 = sbr.rel (%p197) target = $region36
        $region35: #{tpu_custom_call.1} parent=31 // pred_region
          %p200 = scmp.lt.s32.totalorder %s21, 1
          %s201 = scalar_select %p200, %s21, 1
          %p202 = scmp.lt.s32.totalorder %s22, 0
          %s203 = scalar_select %p202, %s22, 0
          %s204 = sadd.s32 %s203, %s201
          %s205 = smul.addr %s204, 4
          %s206 = scalar_lea.vmem %s0, %s205
        $region36: #{tpu_custom_call.1} parent=31 // pred_fallthru
          _
      $region32: #{tpu_custom_call.1} parent=5 // pred_fallthru
        _
      %p207 = scmp.le.s32.totalorder 1, %s14
      %p208 = scmp.lt.s32.totalorder %s14, 3
      %p209 = pnand %p207, %p208
      %p210 = pneg %p209
      // Predicated region
      $region37: #{tpu_custom_call.1} parent=5 // pred_check
        _
      $region38: #{tpu_custom_call.1} parent=5 // pred_check_branch
        %212 = sbr.rel (%p209) target = $region40
      $region39: #{tpu_custom_call.1} parent=5 // pred_region
        %s213 = ssub.s32 %s14, 1
        %p214 = scmp.lt.s32.totalorder %s23, 1
        %s215 = scalar_select %p214, %s23, 1
        %p216 = scmp.lt.s32.totalorder %s24, 0
        %s217 = scalar_select %p216, %s24, 0
        %s218 = sadd.s32 %s217, %s215
        %s219 = smul.addr %s218, 4
        %s220 = scalar_lea.vmem %s0, %s219
        %p221 = pneg %p54
        %p222 = pneg %p51
        %p223 = pneg %p75
        %p224 = pneg %p72
        %p225 = pneg %p96
        %p226 = pneg %p93
        %p227 = pneg %p117
        %p228 = pneg %p114
        %p229 = pneg %p138
        %p230 = pneg %p135
        %p231 = pneg %p166
        %p232 = pneg %p163
        %s233 = sand.u32 %s153, 1
        %s234 = scalar_lea.sflag [#allocation3], %s233
        %s235 = sand.u32 %s153, 1
        %s236 = smul.addr %s235, 4
        %s237 = scalar_lea.vmem [#allocation2], %s236
        %p238 = scmp.lt.s32.totalorder %s23, 1
        %s239 = scalar_select %p238, %s23, 1
        %p240 = scmp.lt.s32.totalorder %s24, 0
        %s241 = scalar_select %p240, %s24, 0
        %s242 = sadd.s32 %s241, %s239
        %s243 = smul.addr %s242, 4
        %s244 = scalar_lea.vmem %s0, %s243
        %v245 = vld [vmem:[%s1] sm:$0xff]
        %v246 = vld [vmem:[%s1 + $0x8] sm:$0xff]
        %v247 = vld [vmem:[%s244] sm:$0xf]
        %v248 = vld [vmem:[%s2] sm:$0xff]
        %v249 = vld [vmem:[%s2 + $0x8] sm:$0xff]
        %251 = vset.pattern.permute.xlu0 0
        %252 = vperm.xlu0 %251, %v248
        %v253 = vpop.permute.xlu0 %252
        %256 = vset.pattern.permute.xlu0 0
        %257 = vperm.xlu0 %256, %v249
        %v258 = vpop.permute.xlu0 %257
        %vm260 = vcmask 31744
        %v262 = vsel %vm260, %v245, 0
        %v265 = vsel %vm260, %v246, 0
        %vm267 = vcmask 1043456
        %v269 = vsel %vm267, %v247, 0
        %271 = vmatprep.subr.mxu0 0.0
        %v272 = vand.u32 %v269, 4294901760
        %273 = vmatpush1.msra.mxu0 %v272
        %274 = vmatprep.subr.mxu0 0.0
        %275 = vmatpush1.msra.mxu0 0.0
        %276 = vmatprep.subr.mxu0 0.0
        %277 = vmatpush1.msra.mxu0 0.0
        %278 = vmatprep.subr.mxu0 0.0
        %279 = vmatpush1.msra.mxu0 0.0
        %280 = vmatprep.subr.mxu0 0.0
        %281 = vmatpush1.msra.mxu0 0.0
        %282 = vmatprep.subr.mxu0 0.0
        %283 = vmatpush1.msra.mxu0 0.0
        %284 = vmatprep.subr.mxu0 0.0
        %285 = vmatpush1.msra.mxu0 0.0
        %286 = vmatprep.subr.mxu0 0.0
        %287 = vmatpush1.msra.mxu0 0.0
        %288 = vmatprep.subr.mxu0 0.0
        %289 = vmatpush1.msra.mxu0 0.0
        %290 = vmatprep.subr.mxu0 0.0
        %291 = vmatpush1.msra.mxu0 0.0
        %292 = vmatprep.subr.mxu0 0.0
        %293 = vmatpush1.msra.mxu0 0.0
        %294 = vmatprep.subr.mxu0 0.0
        %295 = vmatpush1.msra.mxu0 0.0
        %296 = vmatprep.subr.mxu0 0.0
        %297 = vmatpush1.msra.mxu0 0.0
        %298 = vmatprep.subr.mxu0 0.0
        %299 = vmatpush1.msra.mxu0 0.0
        %300 = vmatprep.subr.mxu0 0.0
        %301 = vmatpush1.msra.mxu0 0.0
        %302 = vmatprep.subr.mxu0 0.0
        %303 = vmatpush1.msra.mxu0 0.0
        %304 = vmatprep.subr.mxu0 0.0
        %305 = vmatpush1.msra.mxu0 0.0
        %306 = vmatprep.subr.mxu0 0.0
        %307 = vmatpush1.msra.mxu0 0.0
        %308 = vmatprep.subr.mxu0 0.0
        %309 = vmatpush1.msra.mxu0 0.0
        %310 = vmatprep.subr.mxu0 0.0
        %311 = vmatpush1.msra.mxu0 0.0
        %312 = vmatprep.subr.mxu0 0.0
        %313 = vmatpush1.msra.mxu0 0.0
        %314 = vmatprep.subr.mxu0 0.0
        %315 = vmatpush1.msra.mxu0 0.0
        %316 = vmatprep.subr.mxu0 0.0
        %317 = vmatpush1.msra.mxu0 0.0
        %318 = vmatprep.subr.mxu0 0.0
        %319 = vmatpush1.msra.mxu0 0.0
        %320 = vmatprep.subr.mxu0 0.0
        %321 = vmatpush1.msra.mxu0 0.0
        %322 = vmatprep.subr.mxu0 0.0
        %323 = vmatpush1.msra.mxu0 0.0
        %324 = vmatprep.subr.mxu0 0.0
        %325 = vmatpush1.msra.mxu0 0.0
        %326 = vmatprep.subr.mxu0 0.0
        %327 = vmatpush1.msra.mxu0 0.0
        %328 = vmatprep.subr.mxu0 0.0
        %329 = vmatpush1.msra.mxu0 0.0
        %330 = vmatprep.subr.mxu0 0.0
        %331 = vmatpush1.msra.mxu0 0.0
        %332 = vmatprep.subr.mxu0 0.0
        %333 = vmatpush1.msra.mxu0 0.0
        %334 = vmatprep.subr.mxu0 0.0
        %335 = vmatpush1.msra.mxu0 0.0
        %336 = vmatprep.mubr.f32.mxu0 0.0
        %v337 = vand.u32 %v262, 4294901760
        %v338 = vsub.f32 %v262, %v337
        %v339 = vand.u32 %v338, 4294901760
        %v340 = vsub.f32 %v338, %v339
        %v341 = vand.u32 %v340, 4294901760
        %342 = vmatmul.mubr.f32.gmra.mrb[0].mxu0 %v341
        %v343 = vpop.f32.mrb[0].mxu0
        %v344 = vadd.f32 %v253, %v343
        %v345 = vpop.f32.mrb[0].mxu0
        %346 = vmatprep.mubr.f32.mxu0 0.0
        %v347 = vand.u32 %v265, 4294901760
        %v348 = vsub.f32 %v265, %v347
        %v349 = vand.u32 %v348, 4294901760
        %v350 = vsub.f32 %v348, %v349
        %v351 = vand.u32 %v350, 4294901760
        %352 = vmatmul.mubr.f32.gmra.mrb[0].mxu0 %v351
        %v353 = vpop.f32.mrb[0].mxu0
        %v354 = vadd.f32 %v258, %v353
        %v355 = vpop.f32.mrb[0].mxu0
        %356 = vdwg.mxu0
        %357 = vmatprep.subr.mxu0 0.0
        %v358 = vand.u32 %v269, 4294901760
        %v359 = vsub.f32 %v269, %v358
        %v360 = vand.u32 %v359, 4294901760
        %v361 = vsub.f32 %v359, %v360
        %v362 = vand.u32 %v361, 4294901760
        %363 = vmatpush1.msra.mxu0 %v362
        %364 = vmatprep.subr.mxu0 0.0
        %365 = vmatpush1.msra.mxu0 0.0
        %366 = vmatprep.subr.mxu0 0.0
        %367 = vmatpush1.msra.mxu0 0.0
        %368 = vmatprep.subr.mxu0 0.0
        %369 = vmatpush1.msra.mxu0 0.0
        %370 = vmatprep.subr.mxu0 0.0
        %371 = vmatpush1.msra.mxu0 0.0
        %372 = vmatprep.subr.mxu0 0.0
        %373 = vmatpush1.msra.mxu0 0.0
        %374 = vmatprep.subr.mxu0 0.0
        %375 = vmatpush1.msra.mxu0 0.0
        %376 = vmatprep.subr.mxu0 0.0
        %377 = vmatpush1.msra.mxu0 0.0
        %378 = vmatprep.subr.mxu0 0.0
        %379 = vmatpush1.msra.mxu0 0.0
        %380 = vmatprep.subr.mxu0 0.0
        %381 = vmatpush1.msra.mxu0 0.0
        %382 = vmatprep.subr.mxu0 0.0
        %383 = vmatpush1.msra.mxu0 0.0
        %384 = vmatprep.subr.mxu0 0.0
        %385 = vmatpush1.msra.mxu0 0.0
        %386 = vmatprep.subr.mxu0 0.0
        %387 = vmatpush1.msra.mxu0 0.0
        %388 = vmatprep.subr.mxu0 0.0
        %389 = vmatpush1.msra.mxu0 0.0
        %390 = vmatprep.subr.mxu0 0.0
        %391 = vmatpush1.msra.mxu0 0.0
        %392 = vmatprep.subr.mxu0 0.0
        %393 = vmatpush1.msra.mxu0 0.0
        %394 = vmatprep.subr.mxu0 0.0
        %395 = vmatpush1.msra.mxu0 0.0
        %396 = vmatprep.subr.mxu0 0.0
        %397 = vmatpush1.msra.mxu0 0.0
        %398 = vmatprep.subr.mxu0 0.0
        %399 = vmatpush1.msra.mxu0 0.0
        %400 = vmatprep.subr.mxu0 0.0
        %401 = vmatpush1.msra.mxu0 0.0
        %402 = vmatprep.subr.mxu0 0.0
        %403 = vmatpush1.msra.mxu0 0.0
        %404 = vmatprep.subr.mxu0 0.0
        %405 = vmatpush1.msra.mxu0 0.0
        %406 = vmatprep.subr.mxu0 0.0
        %407 = vmatpush1.msra.mxu0 0.0
        %408 = vmatprep.subr.mxu0 0.0
        %409 = vmatpush1.msra.mxu0 0.0
        %410 = vmatprep.subr.mxu0 0.0
        %411 = vmatpush1.msra.mxu0 0.0
        %412 = vmatprep.subr.mxu0 0.0
        %413 = vmatpush1.msra.mxu0 0.0
        %414 = vmatprep.subr.mxu0 0.0
        %415 = vmatpush1.msra.mxu0 0.0
        %416 = vmatprep.subr.mxu0 0.0
        %417 = vmatpush1.msra.mxu0 0.0
        %418 = vmatprep.subr.mxu0 0.0
        %419 = vmatpush1.msra.mxu0 0.0
        %420 = vmatprep.subr.mxu0 0.0
        %421 = vmatpush1.msra.mxu0 0.0
        %422 = vmatprep.subr.mxu0 0.0
        %423 = vmatpush1.msra.mxu0 0.0
        %424 = vmatprep.subr.mxu0 0.0
        %425 = vmatpush1.msra.mxu0 0.0
        %426 = vmatprep.mubr.f32.mxu0 0.0
        %v427 = vand.u32 %v262, 4294901760
        %428 = vmatmul.mubr.f32.gmra.mrb[0].mxu0 %v427
        %v429 = vpop.f32.mrb[0].mxu0
        %v430 = vadd.f32 %v344, %v429
        %v431 = vpop.f32.mrb[0].mxu0
        %432 = vmatprep.mubr.f32.mxu0 0.0
        %v433 = vand.u32 %v265, 4294901760
        %434 = vmatmul.mubr.f32.gmra.mrb[0].mxu0 %v433
        %v435 = vpop.f32.mrb[0].mxu0
        %v436 = vadd.f32 %v354, %v435
        %v437 = vpop.f32.mrb[0].mxu0
        %438 = vdwg.mxu0
        %439 = vmatprep.subr.mxu0 0.0
        %v440 = vand.u32 %v269, 4294901760
        %v441 = vsub.f32 %v269, %v440
        %442 = vmatpush1.msra.mxu0 %v441
        %443 = vmatprep.subr.mxu0 0.0
        %444 = vmatpush1.msra.mxu0 0.0
        %445 = vmatprep.subr.mxu0 0.0
        %446 = vmatpush1.msra.mxu0 0.0
        %447 = vmatprep.subr.mxu0 0.0
        %448 = vmatpush1.msra.mxu0 0.0
        %449 = vmatprep.subr.mxu0 0.0
        %450 = vmatpush1.msra.mxu0 0.0
        %451 = vmatprep.subr.mxu0 0.0
        %452 = vmatpush1.msra.mxu0 0.0
        %453 = vmatprep.subr.mxu0 0.0
        %454 = vmatpush1.msra.mxu0 0.0
        %455 = vmatprep.subr.mxu0 0.0
        %456 = vmatpush1.msra.mxu0 0.0
        %457 = vmatprep.subr.mxu0 0.0
        %458 = vmatpush1.msra.mxu0 0.0
        %459 = vmatprep.subr.mxu0 0.0
        %460 = vmatpush1.msra.mxu0 0.0
        %461 = vmatprep.subr.mxu0 0.0
        %462 = vmatpush1.msra.mxu0 0.0
        %463 = vmatprep.subr.mxu0 0.0
        %464 = vmatpush1.msra.mxu0 0.0
        %465 = vmatprep.subr.mxu0 0.0
        %466 = vmatpush1.msra.mxu0 0.0
        %467 = vmatprep.subr.mxu0 0.0
        %468 = vmatpush1.msra.mxu0 0.0
        %469 = vmatprep.subr.mxu0 0.0
        %470 = vmatpush1.msra.mxu0 0.0
        %471 = vmatprep.subr.mxu0 0.0
        %472 = vmatpush1.msra.mxu0 0.0
        %473 = vmatprep.subr.mxu0 0.0
        %474 = vmatpush1.msra.mxu0 0.0
        %475 = vmatprep.subr.mxu0 0.0
        %476 = vmatpush1.msra.mxu0 0.0
        %477 = vmatprep.subr.mxu0 0.0
        %478 = vmatpush1.msra.mxu0 0.0
        %479 = vmatprep.subr.mxu0 0.0
        %480 = vmatpush1.msra.mxu0 0.0
        %481 = vmatprep.subr.mxu0 0.0
        %482 = vmatpush1.msra.mxu0 0.0
        %483 = vmatprep.subr.mxu0 0.0
        %484 = vmatpush1.msra.mxu0 0.0
        %485 = vmatprep.subr.mxu0 0.0
        %486 = vmatpush1.msra.mxu0 0.0
        %487 = vmatprep.subr.mxu0 0.0
        %488 = vmatpush1.msra.mxu0 0.0
        %489 = vmatprep.subr.mxu0 0.0
        %490 = vmatpush1.msra.mxu0 0.0
        %491 = vmatprep.subr.mxu0 0.0
        %492 = vmatpush1.msra.mxu0 0.0
        %493 = vmatprep.subr.mxu0 0.0
        %494 = vmatpush1.msra.mxu0 0.0
        %495 = vmatprep.subr.mxu0 0.0
        %496 = vmatpush1.msra.mxu0 0.0
        %497 = vmatprep.subr.mxu0 0.0
        %498 = vmatpush1.msra.mxu0 0.0
        %499 = vmatprep.subr.mxu0 0.0
        %500 = vmatpush1.msra.mxu0 0.0
        %501 = vmatprep.subr.mxu0 0.0
        %502 = vmatpush1.msra.mxu0 0.0
        %503 = vmatprep.subr.mxu0 0.0
        %504 = vmatpush1.msra.mxu0 0.0
        %505 = vmatprep.mubr.f32.mxu0 0.0
        %v506 = vand.u32 %v262, 4294901760
        %v507 = vsub.f32 %v262, %v506
        %508 = vmatmul.mubr.f32.gmra.mrb[0].mxu0 %v507
        %v509 = vpop.f32.mrb[0].mxu0
        %v510 = vadd.f32 %v430, %v509
        %v511 = vpop.f32.mrb[0].mxu0
        %512 = vmatprep.mubr.f32.mxu0 0.0
        %v513 = vand.u32 %v265, 4294901760
        %v514 = vsub.f32 %v265, %v513
        %515 = vmatmul.mubr.f32.gmra.mrb[0].mxu0 %v514
        %v516 = vpop.f32.mrb[0].mxu0
        %v517 = vadd.f32 %v436, %v516
        %v518 = vpop.f32.mrb[0].mxu0
        %519 = vdwg.mxu0
        %520 = vmatprep.subr.mxu0 0.0
        %v521 = vand.u32 %v269, 4294901760
        %522 = vmatpush1.msra.mxu0 %v521
        %523 = vmatprep.subr.mxu0 0.0
        %524 = vmatpush1.msra.mxu0 0.0
        %525 = vmatprep.subr.mxu0 0.0
        %526 = vmatpush1.msra.mxu0 0.0
        %527 = vmatprep.subr.mxu0 0.0
        %528 = vmatpush1.msra.mxu0 0.0
        %529 = vmatprep.subr.mxu0 0.0
        %530 = vmatpush1.msra.mxu0 0.0
        %531 = vmatprep.subr.mxu0 0.0
        %532 = vmatpush1.msra.mxu0 0.0
        %533 = vmatprep.subr.mxu0 0.0
        %534 = vmatpush1.msra.mxu0 0.0
        %535 = vmatprep.subr.mxu0 0.0
        %536 = vmatpush1.msra.mxu0 0.0
        %537 = vmatprep.subr.mxu0 0.0
        %538 = vmatpush1.msra.mxu0 0.0
        %539 = vmatprep.subr.mxu0 0.0
        %540 = vmatpush1.msra.mxu0 0.0
        %541 = vmatprep.subr.mxu0 0.0
        %542 = vmatpush1.msra.mxu0 0.0
        %543 = vmatprep.subr.mxu0 0.0
        %544 = vmatpush1.msra.mxu0 0.0
        %545 = vmatprep.subr.mxu0 0.0
        %546 = vmatpush1.msra.mxu0 0.0
        %547 = vmatprep.subr.mxu0 0.0
        %548 = vmatpush1.msra.mxu0 0.0
        %549 = vmatprep.subr.mxu0 0.0
        %550 = vmatpush1.msra.mxu0 0.0
        %551 = vmatprep.subr.mxu0 0.0
        %552 = vmatpush1.msra.mxu0 0.0
        %553 = vmatprep.subr.mxu0 0.0
        %554 = vmatpush1.msra.mxu0 0.0
        %555 = vmatprep.subr.mxu0 0.0
        %556 = vmatpush1.msra.mxu0 0.0
        %557 = vmatprep.subr.mxu0 0.0
        %558 = vmatpush1.msra.mxu0 0.0
        %559 = vmatprep.subr.mxu0 0.0
        %560 = vmatpush1.msra.mxu0 0.0
        %561 = vmatprep.subr.mxu0 0.0
        %562 = vmatpush1.msra.mxu0 0.0
        %563 = vmatprep.subr.mxu0 0.0
        %564 = vmatpush1.msra.mxu0 0.0
        %565 = vmatprep.subr.mxu0 0.0
        %566 = vmatpush1.msra.mxu0 0.0
        %567 = vmatprep.subr.mxu0 0.0
        %568 = vmatpush1.msra.mxu0 0.0
        %569 = vmatprep.subr.mxu0 0.0
        %570 = vmatpush1.msra.mxu0 0.0
        %571 = vmatprep.subr.mxu0 0.0
        %572 = vmatpush1.msra.mxu0 0.0
        %573 = vmatprep.subr.mxu0 0.0
        %574 = vmatpush1.msra.mxu0 0.0
        %575 = vmatprep.subr.mxu0 0.0
        %576 = vmatpush1.msra.mxu0 0.0
        %577 = vmatprep.subr.mxu0 0.0
        %578 = vmatpush1.msra.mxu0 0.0
        %579 = vmatprep.subr.mxu0 0.0
        %580 = vmatpush1.msra.mxu0 0.0
        %581 = vmatprep.subr.mxu0 0.0
        %582 = vmatpush1.msra.mxu0 0.0
        %583 = vmatprep.subr.mxu0 0.0
        %584 = vmatpush1.msra.mxu0 0.0
        %585 = vmatprep.mubr.f32.mxu0 0.0
        %v586 = vand.u32 %v262, 4294901760
        %v587 = vsub.f32 %v262, %v586
        %v588 = vand.u32 %v587, 4294901760
        %589 = vmatmul.mubr.f32.gmra.mrb[0].mxu0 %v588
        %v590 = vpop.f32.mrb[0].mxu0
        %v591 = vadd.f32 %v510, %v590
        %v592 = vpop.f32.mrb[0].mxu0
        %593 = vmatprep.mubr.f32.mxu0 0.0
        %v594 = vand.u32 %v265, 4294901760
        %v595 = vsub.f32 %v265, %v594
        %v596 = vand.u32 %v595, 4294901760
        %597 = vmatmul.mubr.f32.gmra.mrb[0].mxu0 %v596
        %v598 = vpop.f32.mrb[0].mxu0
        %v599 = vadd.f32 %v517, %v598
        %v600 = vpop.f32.mrb[0].mxu0
        %601 = vdwg.mxu0
        %602 = vmatprep.subr.mxu0 0.0
        %v603 = vand.u32 %v269, 4294901760
        %v604 = vsub.f32 %v269, %v603
        %v605 = vand.u32 %v604, 4294901760
        %606 = vmatpush1.msra.mxu0 %v605
        %607 = vmatprep.subr.mxu0 0.0
        %608 = vmatpush1.msra.mxu0 0.0
        %609 = vmatprep.subr.mxu0 0.0
        %610 = vmatpush1.msra.mxu0 0.0
        %611 = vmatprep.subr.mxu0 0.0
        %612 = vmatpush1.msra.mxu0 0.0
        %613 = vmatprep.subr.mxu0 0.0
        %614 = vmatpush1.msra.mxu0 0.0
        %615 = vmatprep.subr.mxu0 0.0
        %616 = vmatpush1.msra.mxu0 0.0
        %617 = vmatprep.subr.mxu0 0.0
        %618 = vmatpush1.msra.mxu0 0.0
        %619 = vmatprep.subr.mxu0 0.0
        %620 = vmatpush1.msra.mxu0 0.0
        %621 = vmatprep.subr.mxu0 0.0
        %622 = vmatpush1.msra.mxu0 0.0
        %623 = vmatprep.subr.mxu0 0.0
        %624 = vmatpush1.msra.mxu0 0.0
        %625 = vmatprep.subr.mxu0 0.0
        %626 = vmatpush1.msra.mxu0 0.0
        %627 = vmatprep.subr.mxu0 0.0
        %628 = vmatpush1.msra.mxu0 0.0
        %629 = vmatprep.subr.mxu0 0.0
        %630 = vmatpush1.msra.mxu0 0.0
        %631 = vmatprep.subr.mxu0 0.0
        %632 = vmatpush1.msra.mxu0 0.0
        %633 = vmatprep.subr.mxu0 0.0
        %634 = vmatpush1.msra.mxu0 0.0
        %635 = vmatprep.subr.mxu0 0.0
        %636 = vmatpush1.msra.mxu0 0.0
        %637 = vmatprep.subr.mxu0 0.0
        %638 = vmatpush1.msra.mxu0 0.0
        %639 = vmatprep.subr.mxu0 0.0
        %640 = vmatpush1.msra.mxu0 0.0
        %641 = vmatprep.subr.mxu0 0.0
        %642 = vmatpush1.msra.mxu0 0.0
        %643 = vmatprep.subr.mxu0 0.0
        %644 = vmatpush1.msra.mxu0 0.0
        %645 = vmatprep.subr.mxu0 0.0
        %646 = vmatpush1.msra.mxu0 0.0
        %647 = vmatprep.subr.mxu0 0.0
        %648 = vmatpush1.msra.mxu0 0.0
        %649 = vmatprep.subr.mxu0 0.0
        %650 = vmatpush1.msra.mxu0 0.0
        %651 = vmatprep.subr.mxu0 0.0
        %652 = vmatpush1.msra.mxu0 0.0
        %653 = vmatprep.subr.mxu0 0.0
        %654 = vmatpush1.msra.mxu0 0.0
        %655 = vmatprep.subr.mxu0 0.0
        %656 = vmatpush1.msra.mxu0 0.0
        %657 = vmatprep.subr.mxu0 0.0
        %658 = vmatpush1.msra.mxu0 0.0
        %659 = vmatprep.subr.mxu0 0.0
        %660 = vmatpush1.msra.mxu0 0.0
        %661 = vmatprep.subr.mxu0 0.0
        %662 = vmatpush1.msra.mxu0 0.0
        %663 = vmatprep.subr.mxu0 0.0
        %664 = vmatpush1.msra.mxu0 0.0
        %665 = vmatprep.subr.mxu0 0.0
        %666 = vmatpush1.msra.mxu0 0.0
        %667 = vmatprep.subr.mxu0 0.0
        %668 = vmatpush1.msra.mxu0 0.0
        %669 = vmatprep.mubr.f32.mxu0 0.0
        %v670 = vand.u32 %v262, 4294901760
        %671 = vmatmul.mubr.f32.gmra.mrb[0].mxu0 %v670
        %v672 = vpop.f32.mrb[0].mxu0
        %v673 = vadd.f32 %v591, %v672
        %v674 = vpop.f32.mrb[0].mxu0
        %675 = vmatprep.mubr.f32.mxu0 0.0
        %v676 = vand.u32 %v265, 4294901760
        %677 = vmatmul.mubr.f32.gmra.mrb[0].mxu0 %v676
        %v678 = vpop.f32.mrb[0].mxu0
        %v679 = vadd.f32 %v599, %v678
        %v680 = vpop.f32.mrb[0].mxu0
        %681 = vdwg.mxu0
        %682 = vmatprep.subr.mxu0 0.0
        %v683 = vand.u32 %v269, 4294901760
        %684 = vmatpush1.msra.mxu0 %v683
        %685 = vmatprep.subr.mxu0 0.0
        %686 = vmatpush1.msra.mxu0 0.0
        %687 = vmatprep.subr.mxu0 0.0
        %688 = vmatpush1.msra.mxu0 0.0
        %689 = vmatprep.subr.mxu0 0.0
        %690 = vmatpush1.msra.mxu0 0.0
        %691 = vmatprep.subr.mxu0 0.0
        %692 = vmatpush1.msra.mxu0 0.0
        %693 = vmatprep.subr.mxu0 0.0
        %694 = vmatpush1.msra.mxu0 0.0
        %695 = vmatprep.subr.mxu0 0.0
        %696 = vmatpush1.msra.mxu0 0.0
        %697 = vmatprep.subr.mxu0 0.0
        %698 = vmatpush1.msra.mxu0 0.0
        %699 = vmatprep.subr.mxu0 0.0
        %700 = vmatpush1.msra.mxu0 0.0
        %701 = vmatprep.subr.mxu0 0.0
        %702 = vmatpush1.msra.mxu0 0.0
        %703 = vmatprep.subr.mxu0 0.0
        %704 = vmatpush1.msra.mxu0 0.0
        %705 = vmatprep.subr.mxu0 0.0
        %706 = vmatpush1.msra.mxu0 0.0
        %707 = vmatprep.subr.mxu0 0.0
        %708 = vmatpush1.msra.mxu0 0.0
        %709 = vmatprep.subr.mxu0 0.0
        %710 = vmatpush1.msra.mxu0 0.0
        %711 = vmatprep.subr.mxu0 0.0
        %712 = vmatpush1.msra.mxu0 0.0
        %713 = vmatprep.subr.mxu0 0.0
        %714 = vmatpush1.msra.mxu0 0.0
        %715 = vmatprep.subr.mxu0 0.0
        %716 = vmatpush1.msra.mxu0 0.0
        %717 = vmatprep.subr.mxu0 0.0
        %718 = vmatpush1.msra.mxu0 0.0
        %719 = vmatprep.subr.mxu0 0.0
        %720 = vmatpush1.msra.mxu0 0.0
        %721 = vmatprep.subr.mxu0 0.0
        %722 = vmatpush1.msra.mxu0 0.0
        %723 = vmatprep.subr.mxu0 0.0
        %724 = vmatpush1.msra.mxu0 0.0
        %725 = vmatprep.subr.mxu0 0.0
        %726 = vmatpush1.msra.mxu0 0.0
        %727 = vmatprep.subr.mxu0 0.0
        %728 = vmatpush1.msra.mxu0 0.0
        %729 = vmatprep.subr.mxu0 0.0
        %730 = vmatpush1.msra.mxu0 0.0
        %731 = vmatprep.subr.mxu0 0.0
        %732 = vmatpush1.msra.mxu0 0.0
        %733 = vmatprep.subr.mxu0 0.0
        %734 = vmatpush1.msra.mxu0 0.0
        %735 = vmatprep.subr.mxu0 0.0
        %736 = vmatpush1.msra.mxu0 0.0
        %737 = vmatprep.subr.mxu0 0.0
        %738 = vmatpush1.msra.mxu0 0.0
        %739 = vmatprep.subr.mxu0 0.0
        %740 = vmatpush1.msra.mxu0 0.0
        %741 = vmatprep.subr.mxu0 0.0
        %742 = vmatpush1.msra.mxu0 0.0
        %743 = vmatprep.subr.mxu0 0.0
        %744 = vmatpush1.msra.mxu0 0.0
        %745 = vmatprep.subr.mxu0 0.0
        %746 = vmatpush1.msra.mxu0 0.0
        %747 = vmatprep.mubr.f32.mxu0 0.0
        %v748 = vand.u32 %v262, 4294901760
        %749 = vmatmul.mubr.f32.gmra.mrb[0].mxu0 %v748
        %v750 = vpop.f32.mrb[0].mxu0
        %v751 = vadd.f32 %v673, %v750
        %v752 = vpop.f32.mrb[0].mxu0
        %753 = vmatprep.mubr.f32.mxu0 0.0
        %v754 = vand.u32 %v265, 4294901760
        %755 = vmatmul.mubr.f32.gmra.mrb[0].mxu0 %v754
        %v756 = vpop.f32.mrb[0].mxu0
        %v757 = vadd.f32 %v679, %v756
        %v758 = vpop.f32.mrb[0].mxu0
        %759 = vdwg.mxu0
        %v760 = vmul.f32 %v751, 0.5
        %v761 = vmul.f32 %v757, 0.5
        %v762 = vmul.f32 %v751, 0.70710677
        %v763 = vmul.f32 %v757, 0.70710677
        %v764 = verf.f32.pop %v762
        %v765 = verf.f32.pop %v763
        %v766 = vadd.f32 %v764, 1.0
        %v767 = vadd.f32 %v765, 1.0
        %v768 = vmul.f32 %v760, %v766
        %v769 = vmul.f32 %v761, %v767
        %v770 = vld [vmem:[%s3] sm:$0xf]
        %v771 = vld [vmem:[%s4] sm:$0xf]
        %773 = vset.pattern.permute.xlu0 0
        %774 = vperm.xlu0 %773, %v771
        %v775 = vpop.permute.xlu0 %774
        %vm777 = vcmask 130048
        %v779 = vsel %vm777, %v770, 0
        %781 = vmatprep.subr.mxu0 0.0
        %v782 = vand.u32 %v768, 4294901760
        %783 = vmatpush1.msra.mxu0 %v782
        %784 = vmatprep.subr.mxu0 0.0
        %v785 = vand.u32 %v769, 4294901760
        %786 = vmatpush1.msra.mxu0 %v785
        %787 = vmatprep.subr.mxu0 0.0
        %788 = vmatpush1.msra.mxu0 0.0
        %789 = vmatprep.subr.mxu0 0.0
        %790 = vmatpush1.msra.mxu0 0.0
        %791 = vmatprep.subr.mxu0 0.0
        %792 = vmatpush1.msra.mxu0 0.0
        %793 = vmatprep.subr.mxu0 0.0
        %794 = vmatpush1.msra.mxu0 0.0
        %795 = vmatprep.subr.mxu0 0.0
        %796 = vmatpush1.msra.mxu0 0.0
        %797 = vmatprep.subr.mxu0 0.0
        %798 = vmatpush1.msra.mxu0 0.0
        %799 = vmatprep.subr.mxu0 0.0
        %800 = vmatpush1.msra.mxu0 0.0
        %801 = vmatprep.subr.mxu0 0.0
        %802 = vmatpush1.msra.mxu0 0.0
        %803 = vmatprep.subr.mxu0 0.0
        %804 = vmatpush1.msra.mxu0 0.0
        %805 = vmatprep.subr.mxu0 0.0
        %806 = vmatpush1.msra.mxu0 0.0
        %807 = vmatprep.subr.mxu0 0.0
        %808 = vmatpush1.msra.mxu0 0.0
        %809 = vmatprep.subr.mxu0 0.0
        %810 = vmatpush1.msra.mxu0 0.0
        %811 = vmatprep.subr.mxu0 0.0
        %812 = vmatpush1.msra.mxu0 0.0
        %813 = vmatprep.subr.mxu0 0.0
        %814 = vmatpush1.msra.mxu0 0.0
        %815 = vmatprep.subr.mxu0 0.0
        %816 = vmatpush1.msra.mxu0 0.0
        %817 = vmatprep.subr.mxu0 0.0
        %818 = vmatpush1.msra.mxu0 0.0
        %819 = vmatprep.subr.mxu0 0.0
        %820 = vmatpush1.msra.mxu0 0.0
        %821 = vmatprep.subr.mxu0 0.0
        %822 = vmatpush1.msra.mxu0 0.0
        %823 = vmatprep.subr.mxu0 0.0
        %824 = vmatpush1.msra.mxu0 0.0
        %825 = vmatprep.subr.mxu0 0.0
        %826 = vmatpush1.msra.mxu0 0.0
        %827 = vmatprep.subr.mxu0 0.0
        %828 = vmatpush1.msra.mxu0 0.0
        %829 = vmatprep.subr.mxu0 0.0
        %830 = vmatpush1.msra.mxu0 0.0
        %831 = vmatprep.subr.mxu0 0.0
        %832 = vmatpush1.msra.mxu0 0.0
        %833 = vmatprep.subr.mxu0 0.0
        %834 = vmatpush1.msra.mxu0 0.0
        %835 = vmatprep.subr.mxu0 0.0
        %836 = vmatpush1.msra.mxu0 0.0
        %837 = vmatprep.subr.mxu0 0.0
        %838 = vmatpush1.msra.mxu0 0.0
        %839 = vmatprep.subr.mxu0 0.0
        %840 = vmatpush1.msra.mxu0 0.0
        %841 = vmatprep.subr.mxu0 0.0
        %842 = vmatpush1.msra.mxu0 0.0
        %843 = vmatprep.subr.mxu0 0.0
        %844 = vmatpush1.msra.mxu0 0.0
        %845 = vmatprep.subr.mxu0 0.0
        %846 = vmatpush1.msra.mxu0 0.0
        %847 = vmatprep.mubr.f32.mxu0 0.0
        %v848 = vand.u32 %v779, 4294901760
        %v849 = vsub.f32 %v779, %v848
        %v850 = vand.u32 %v849, 4294901760
        %v851 = vsub.f32 %v849, %v850
        %v852 = vand.u32 %v851, 4294901760
        %853 = vmatmul.mubr.f32.gmra.mrb[0].mxu0 %v852
        %v854 = vpop.f32.mrb[0].mxu0
        %v855 = vadd.f32 %v775, %v854
        %v856 = vpop.f32.mrb[0].mxu0
        %857 = vdwg.mxu0
        %858 = vmatprep.subr.mxu0 0.0
        %v859 = vand.u32 %v768, 4294901760
        %v860 = vsub.f32 %v768, %v859
        %v861 = vand.u32 %v860, 4294901760
        %v862 = vsub.f32 %v860, %v861
        %v863 = vand.u32 %v862, 4294901760
        %864 = vmatpush1.msra.mxu0 %v863
        %865 = vmatprep.subr.mxu0 0.0
        %v866 = vand.u32 %v769, 4294901760
        %v867 = vsub.f32 %v769, %v866
        %v868 = vand.u32 %v867, 4294901760
        %v869 = vsub.f32 %v867, %v868
        %v870 = vand.u32 %v869, 4294901760
        %871 = vmatpush1.msra.mxu0 %v870
        %872 = vmatprep.subr.mxu0 0.0
        %873 = vmatpush1.msra.mxu0 0.0
        %874 = vmatprep.subr.mxu0 0.0
        %875 = vmatpush1.msra.mxu0 0.0
        %876 = vmatprep.subr.mxu0 0.0
        %877 = vmatpush1.msra.mxu0 0.0
        %878 = vmatprep.subr.mxu0 0.0
        %879 = vmatpush1.msra.mxu0 0.0
        %880 = vmatprep.subr.mxu0 0.0
        %881 = vmatpush1.msra.mxu0 0.0
        %882 = vmatprep.subr.mxu0 0.0
        %883 = vmatpush1.msra.mxu0 0.0
        %884 = vmatprep.subr.mxu0 0.0
        %885 = vmatpush1.msra.mxu0 0.0
        %886 = vmatprep.subr.mxu0 0.0
        %887 = vmatpush1.msra.mxu0 0.0
        %888 = vmatprep.subr.mxu0 0.0
        %889 = vmatpush1.msra.mxu0 0.0
        %890 = vmatprep.subr.mxu0 0.0
        %891 = vmatpush1.msra.mxu0 0.0
        %892 = vmatprep.subr.mxu0 0.0
        %893 = vmatpush1.msra.mxu0 0.0
        %894 = vmatprep.subr.mxu0 0.0
        %895 = vmatpush1.msra.mxu0 0.0
        %896 = vmatprep.subr.mxu0 0.0
        %897 = vmatpush1.msra.mxu0 0.0
        %898 = vmatprep.subr.mxu0 0.0
        %899 = vmatpush1.msra.mxu0 0.0
        %900 = vmatprep.subr.mxu0 0.0
        %901 = vmatpush1.msra.mxu0 0.0
        %902 = vmatprep.subr.mxu0 0.0
        %903 = vmatpush1.msra.mxu0 0.0
        %904 = vmatprep.subr.mxu0 0.0
        %905 = vmatpush1.msra.mxu0 0.0
        %906 = vmatprep.subr.mxu0 0.0
        %907 = vmatpush1.msra.mxu0 0.0
        %908 = vmatprep.subr.mxu0 0.0
        %909 = vmatpush1.msra.mxu0 0.0
        %910 = vmatprep.subr.mxu0 0.0
        %911 = vmatpush1.msra.mxu0 0.0
        %912 = vmatprep.subr.mxu0 0.0
        %913 = vmatpush1.msra.mxu0 0.0
        %914 = vmatprep.subr.mxu0 0.0
        %915 = vmatpush1.msra.mxu0 0.0
        %916 = vmatprep.subr.mxu0 0.0
        %917 = vmatpush1.msra.mxu0 0.0
        %918 = vmatprep.subr.mxu0 0.0
        %919 = vmatpush1.msra.mxu0 0.0
        %920 = vmatprep.subr.mxu0 0.0
        %921 = vmatpush1.msra.mxu0 0.0
        %922 = vmatprep.subr.mxu0 0.0
        %923 = vmatpush1.msra.mxu0 0.0
        %924 = vmatprep.subr.mxu0 0.0
        %925 = vmatpush1.msra.mxu0 0.0
        %926 = vmatprep.subr.mxu0 0.0
        %927 = vmatpush1.msra.mxu0 0.0
        %928 = vmatprep.subr.mxu0 0.0
        %929 = vmatpush1.msra.mxu0 0.0
        %930 = vmatprep.subr.mxu0 0.0
        %931 = vmatpush1.msra.mxu0 0.0
        %932 = vmatprep.mubr.f32.mxu0 0.0
        %v933 = vand.u32 %v779, 4294901760
        %934 = vmatmul.mubr.f32.gmra.mrb[0].mxu0 %v933
        %v935 = vpop.f32.mrb[0].mxu0
        %v936 = vadd.f32 %v855, %v935
        %v937 = vpop.f32.mrb[0].mxu0
        %938 = vdwg.mxu0
        %939 = vmatprep.subr.mxu0 0.0
        %v940 = vand.u32 %v768, 4294901760
        %v941 = vsub.f32 %v768, %v940
        %942 = vmatpush1.msra.mxu0 %v941
        %943 = vmatprep.subr.mxu0 0.0
        %v944 = vand.u32 %v769, 4294901760
        %v945 = vsub.f32 %v769, %v944
        %946 = vmatpush1.msra.mxu0 %v945
        %947 = vmatprep.subr.mxu0 0.0
        %948 = vmatpush1.msra.mxu0 0.0
        %949 = vmatprep.subr.mxu0 0.0
        %950 = vmatpush1.msra.mxu0 0.0
        %951 = vmatprep.subr.mxu0 0.0
        %952 = vmatpush1.msra.mxu0 0.0
        %953 = vmatprep.subr.mxu0 0.0
        %954 = vmatpush1.msra.mxu0 0.0
        %955 = vmatprep.subr.mxu0 0.0
        %956 = vmatpush1.msra.mxu0 0.0
        %957 = vmatprep.subr.mxu0 0.0
        %958 = vmatpush1.msra.mxu0 0.0
        %959 = vmatprep.subr.mxu0 0.0
        %960 = vmatpush1.msra.mxu0 0.0
        %961 = vmatprep.subr.mxu0 0.0
        %962 = vmatpush1.msra.mxu0 0.0
        %963 = vmatprep.subr.mxu0 0.0
        %964 = vmatpush1.msra.mxu0 0.0
        %965 = vmatprep.subr.mxu0 0.0
        %966 = vmatpush1.msra.mxu0 0.0
        %967 = vmatprep.subr.mxu0 0.0
        %968 = vmatpush1.msra.mxu0 0.0
        %969 = vmatprep.subr.mxu0 0.0
        %970 = vmatpush1.msra.mxu0 0.0
        %971 = vmatprep.subr.mxu0 0.0
        %972 = vmatpush1.msra.mxu0 0.0
        %973 = vmatprep.subr.mxu0 0.0
        %974 = vmatpush1.msra.mxu0 0.0
        %975 = vmatprep.subr.mxu0 0.0
        %976 = vmatpush1.msra.mxu0 0.0
        %977 = vmatprep.subr.mxu0 0.0
        %978 = vmatpush1.msra.mxu0 0.0
        %979 = vmatprep.subr.mxu0 0.0
        %980 = vmatpush1.msra.mxu0 0.0
        %981 = vmatprep.subr.mxu0 0.0
        %982 = vmatpush1.msra.mxu0 0.0
        %983 = vmatprep.subr.mxu0 0.0
        %984 = vmatpush1.msra.mxu0 0.0
        %985 = vmatprep.subr.mxu0 0.0
        %986 = vmatpush1.msra.mxu0 0.0
        %987 = vmatprep.subr.mxu0 0.0
        %988 = vmatpush1.msra.mxu0 0.0
        %989 = vmatprep.subr.mxu0 0.0
        %990 = vmatpush1.msra.mxu0 0.0
        %991 = vmatprep.subr.mxu0 0.0
        %992 = vmatpush1.msra.mxu0 0.0
        %993 = vmatprep.subr.mxu0 0.0
        %994 = vmatpush1.msra.mxu0 0.0
        %995 = vmatprep.subr.mxu0 0.0
        %996 = vmatpush1.msra.mxu0 0.0
        %997 = vmatprep.subr.mxu0 0.0
        %998 = vmatpush1.msra.mxu0 0.0
        %999 = vmatprep.subr.mxu0 0.0
        %1000 = vmatpush1.msra.mxu0 0.0
        %1001 = vmatprep.subr.mxu0 0.0
        %1002 = vmatpush1.msra.mxu0 0.0
        %1003 = vmatprep.subr.mxu0 0.0
        %1004 = vmatpush1.msra.mxu0 0.0
        %1005 = vmatprep.subr.mxu0 0.0
        %1006 = vmatpush1.msra.mxu0 0.0
        %1007 = vmatprep.mubr.f32.mxu0 0.0
        %v1008 = vand.u32 %v779, 4294901760
        %v1009 = vsub.f32 %v779, %v1008
        %1010 = vmatmul.mubr.f32.gmra.mrb[0].mxu0 %v1009
        %v1011 = vpop.f32.mrb[0].mxu0
        %v1012 = vadd.f32 %v936, %v1011
        %v1013 = vpop.f32.mrb[0].mxu0
        %1014 = vdwg.mxu0
        %1015 = vmatprep.subr.mxu0 0.0
        %v1016 = vand.u32 %v768, 4294901760
        %1017 = vmatpush1.msra.mxu0 %v1016
        %1018 = vmatprep.subr.mxu0 0.0
        %v1019 = vand.u32 %v769, 4294901760
        %1020 = vmatpush1.msra.mxu0 %v1019
        %1021 = vmatprep.subr.mxu0 0.0
        %1022 = vmatpush1.msra.mxu0 0.0
        %1023 = vmatprep.subr.mxu0 0.0
        %1024 = vmatpush1.msra.mxu0 0.0
        %1025 = vmatprep.subr.mxu0 0.0
        %1026 = vmatpush1.msra.mxu0 0.0
        %1027 = vmatprep.subr.mxu0 0.0
        %1028 = vmatpush1.msra.mxu0 0.0
        %1029 = vmatprep.subr.mxu0 0.0
        %1030 = vmatpush1.msra.mxu0 0.0
        %1031 = vmatprep.subr.mxu0 0.0
        %1032 = vmatpush1.msra.mxu0 0.0
        %1033 = vmatprep.subr.mxu0 0.0
        %1034 = vmatpush1.msra.mxu0 0.0
        %1035 = vmatprep.subr.mxu0 0.0
        %1036 = vmatpush1.msra.mxu0 0.0
        %1037 = vmatprep.subr.mxu0 0.0
        %1038 = vmatpush1.msra.mxu0 0.0
        %1039 = vmatprep.subr.mxu0 0.0
        %1040 = vmatpush1.msra.mxu0 0.0
        %1041 = vmatprep.subr.mxu0 0.0
        %1042 = vmatpush1.msra.mxu0 0.0
        %1043 = vmatprep.subr.mxu0 0.0
        %1044 = vmatpush1.msra.mxu0 0.0
        %1045 = vmatprep.subr.mxu0 0.0
        %1046 = vmatpush1.msra.mxu0 0.0
        %1047 = vmatprep.subr.mxu0 0.0
        %1048 = vmatpush1.msra.mxu0 0.0
        %1049 = vmatprep.subr.mxu0 0.0
        %1050 = vmatpush1.msra.mxu0 0.0
        %1051 = vmatprep.subr.mxu0 0.0
        %1052 = vmatpush1.msra.mxu0 0.0
        %1053 = vmatprep.subr.mxu0 0.0
        %1054 = vmatpush1.msra.mxu0 0.0
        %1055 = vmatprep.subr.mxu0 0.0
        %1056 = vmatpush1.msra.mxu0 0.0
        %1057 = vmatprep.subr.mxu0 0.0
        %1058 = vmatpush1.msra.mxu0 0.0
        %1059 = vmatprep.subr.mxu0 0.0
        %1060 = vmatpush1.msra.mxu0 0.0
        %1061 = vmatprep.subr.mxu0 0.0
        %1062 = vmatpush1.msra.mxu0 0.0
        %1063 = vmatprep.subr.mxu0 0.0
        %1064 = vmatpush1.msra.mxu0 0.0
        %1065 = vmatprep.subr.mxu0 0.0
        %1066 = vmatpush1.msra.mxu0 0.0
        %1067 = vmatprep.subr.mxu0 0.0
        %1068 = vmatpush1.msra.mxu0 0.0
        %1069 = vmatprep.subr.mxu0 0.0
        %1070 = vmatpush1.msra.mxu0 0.0
        %1071 = vmatprep.subr.mxu0 0.0
        %1072 = vmatpush1.msra.mxu0 0.0
        %1073 = vmatprep.subr.mxu0 0.0
        %1074 = vmatpush1.msra.mxu0 0.0
        %1075 = vmatprep.subr.mxu0 0.0
        %1076 = vmatpush1.msra.mxu0 0.0
        %1077 = vmatprep.subr.mxu0 0.0
        %1078 = vmatpush1.msra.mxu0 0.0
        %1079 = vmatprep.subr.mxu0 0.0
        %1080 = vmatpush1.msra.mxu0 0.0
        %1081 = vmatprep.mubr.f32.mxu0 0.0
        %v1082 = vand.u32 %v779, 4294901760
        %v1083 = vsub.f32 %v779, %v1082
        %v1084 = vand.u32 %v1083, 4294901760
        %1085 = vmatmul.mubr.f32.gmra.mrb[0].mxu0 %v1084
        %v1086 = vpop.f32.mrb[0].mxu0
        %v1087 = vadd.f32 %v1012, %v1086
        %v1088 = vpop.f32.mrb[0].mxu0
        %1089 = vdwg.mxu0
        %1090 = vmatprep.subr.mxu0 0.0
        %v1091 = vand.u32 %v768, 4294901760
        %v1092 = vsub.f32 %v768, %v1091
        %v1093 = vand.u32 %v1092, 4294901760
        %1094 = vmatpush1.msra.mxu0 %v1093
        %1095 = vmatprep.subr.mxu0 0.0
        %v1096 = vand.u32 %v769, 4294901760
        %v1097 = vsub.f32 %v769, %v1096
        %v1098 = vand.u32 %v1097, 4294901760
        %1099 = vmatpush1.msra.mxu0 %v1098
        %1100 = vmatprep.subr.mxu0 0.0
        %1101 = vmatpush1.msra.mxu0 0.0
        %1102 = vmatprep.subr.mxu0 0.0
        %1103 = vmatpush1.msra.mxu0 0.0
        %1104 = vmatprep.subr.mxu0 0.0
        %1105 = vmatpush1.msra.mxu0 0.0
        %1106 = vmatprep.subr.mxu0 0.0
        %1107 = vmatpush1.msra.mxu0 0.0
        %1108 = vmatprep.subr.mxu0 0.0
        %1109 = vmatpush1.msra.mxu0 0.0
        %1110 = vmatprep.subr.mxu0 0.0
        %1111 = vmatpush1.msra.mxu0 0.0
        %1112 = vmatprep.subr.mxu0 0.0
        %1113 = vmatpush1.msra.mxu0 0.0
        %1114 = vmatprep.subr.mxu0 0.0
        %1115 = vmatpush1.msra.mxu0 0.0
        %1116 = vmatprep.subr.mxu0 0.0
        %1117 = vmatpush1.msra.mxu0 0.0
        %1118 = vmatprep.subr.mxu0 0.0
        %1119 = vmatpush1.msra.mxu0 0.0
        %1120 = vmatprep.subr.mxu0 0.0
        %1121 = vmatpush1.msra.mxu0 0.0
        %1122 = vmatprep.subr.mxu0 0.0
        %1123 = vmatpush1.msra.mxu0 0.0
        %1124 = vmatprep.subr.mxu0 0.0
        %1125 = vmatpush1.msra.mxu0 0.0
        %1126 = vmatprep.subr.mxu0 0.0
        %1127 = vmatpush1.msra.mxu0 0.0
        %1128 = vmatprep.subr.mxu0 0.0
        %1129 = vmatpush1.msra.mxu0 0.0
        %1130 = vmatprep.subr.mxu0 0.0
        %1131 = vmatpush1.msra.mxu0 0.0
        %1132 = vmatprep.subr.mxu0 0.0
        %1133 = vmatpush1.msra.mxu0 0.0
        %1134 = vmatprep.subr.mxu0 0.0
        %1135 = vmatpush1.msra.mxu0 0.0
        %1136 = vmatprep.subr.mxu0 0.0
        %1137 = vmatpush1.msra.mxu0 0.0
        %1138 = vmatprep.subr.mxu0 0.0
        %1139 = vmatpush1.msra.mxu0 0.0
        %1140 = vmatprep.subr.mxu0 0.0
        %1141 = vmatpush1.msra.mxu0 0.0
        %1142 = vmatprep.subr.mxu0 0.0
        %1143 = vmatpush1.msra.mxu0 0.0
        %1144 = vmatprep.subr.mxu0 0.0
        %1145 = vmatpush1.msra.mxu0 0.0
        %1146 = vmatprep.subr.mxu0 0.0
        %1147 = vmatpush1.msra.mxu0 0.0
        %1148 = vmatprep.subr.mxu0 0.0
        %1149 = vmatpush1.msra.mxu0 0.0
        %1150 = vmatprep.subr.mxu0 0.0
        %1151 = vmatpush1.msra.mxu0 0.0
        %1152 = vmatprep.subr.mxu0 0.0
        %1153 = vmatpush1.msra.mxu0 0.0
        %1154 = vmatprep.subr.mxu0 0.0
        %1155 = vmatpush1.msra.mxu0 0.0
        %1156 = vmatprep.subr.mxu0 0.0
        %1157 = vmatpush1.msra.mxu0 0.0
        %1158 = vmatprep.subr.mxu0 0.0
        %1159 = vmatpush1.msra.mxu0 0.0
        %1160 = vmatprep.mubr.f32.mxu0 0.0
        %v1161 = vand.u32 %v779, 4294901760
        %1162 = vmatmul.mubr.f32.gmra.mrb[0].mxu0 %v1161
        %v1163 = vpop.f32.mrb[0].mxu0
        %v1164 = vadd.f32 %v1087, %v1163
        %v1165 = vpop.f32.mrb[0].mxu0
        %1166 = vdwg.mxu0
        %1167 = vmatprep.subr.mxu0 0.0
        %v1168 = vand.u32 %v768, 4294901760
        %1169 = vmatpush1.msra.mxu0 %v1168
        %1170 = vmatprep.subr.mxu0 0.0
        %v1171 = vand.u32 %v769, 4294901760
        %1172 = vmatpush1.msra.mxu0 %v1171
        %1173 = vmatprep.subr.mxu0 0.0
        %1174 = vmatpush1.msra.mxu0 0.0
        %1175 = vmatprep.subr.mxu0 0.0
        %1176 = vmatpush1.msra.mxu0 0.0
        %1177 = vmatprep.subr.mxu0 0.0
        %1178 = vmatpush1.msra.mxu0 0.0
        %1179 = vmatprep.subr.mxu0 0.0
        %1180 = vmatpush1.msra.mxu0 0.0
        %1181 = vmatprep.subr.mxu0 0.0
        %1182 = vmatpush1.msra.mxu0 0.0
        %1183 = vmatprep.subr.mxu0 0.0
        %1184 = vmatpush1.msra.mxu0 0.0
        %1185 = vmatprep.subr.mxu0 0.0
        %1186 = vmatpush1.msra.mxu0 0.0
        %1187 = vmatprep.subr.mxu0 0.0
        %1188 = vmatpush1.msra.mxu0 0.0
        %1189 = vmatprep.subr.mxu0 0.0
        %1190 = vmatpush1.msra.mxu0 0.0
        %1191 = vmatprep.subr.mxu0 0.0
        %1192 = vmatpush1.msra.mxu0 0.0
        %1193 = vmatprep.subr.mxu0 0.0
        %1194 = vmatpush1.msra.mxu0 0.0
        %1195 = vmatprep.subr.mxu0 0.0
        %1196 = vmatpush1.msra.mxu0 0.0
        %1197 = vmatprep.subr.mxu0 0.0
        %1198 = vmatpush1.msra.mxu0 0.0
        %1199 = vmatprep.subr.mxu0 0.0
        %1200 = vmatpush1.msra.mxu0 0.0
        %1201 = vmatprep.subr.mxu0 0.0
        %1202 = vmatpush1.msra.mxu0 0.0
        %1203 = vmatprep.subr.mxu0 0.0
        %1204 = vmatpush1.msra.mxu0 0.0
        %1205 = vmatprep.subr.mxu0 0.0
        %1206 = vmatpush1.msra.mxu0 0.0
        %1207 = vmatprep.subr.mxu0 0.0
        %1208 = vmatpush1.msra.mxu0 0.0
        %1209 = vmatprep.subr.mxu0 0.0
        %1210 = vmatpush1.msra.mxu0 0.0
        %1211 = vmatprep.subr.mxu0 0.0
        %1212 = vmatpush1.msra.mxu0 0.0
        %1213 = vmatprep.subr.mxu0 0.0
        %1214 = vmatpush1.msra.mxu0 0.0
        %1215 = vmatprep.subr.mxu0 0.0
        %1216 = vmatpush1.msra.mxu0 0.0
        %1217 = vmatprep.subr.mxu0 0.0
        %1218 = vmatpush1.msra.mxu0 0.0
        %1219 = vmatprep.subr.mxu0 0.0
        %1220 = vmatpush1.msra.mxu0 0.0
        %1221 = vmatprep.subr.mxu0 0.0
        %1222 = vmatpush1.msra.mxu0 0.0
        %1223 = vmatprep.subr.mxu0 0.0
        %1224 = vmatpush1.msra.mxu0 0.0
        %1225 = vmatprep.subr.mxu0 0.0
        %1226 = vmatpush1.msra.mxu0 0.0
        %1227 = vmatprep.subr.mxu0 0.0
        %1228 = vmatpush1.msra.mxu0 0.0
        %1229 = vmatprep.subr.mxu0 0.0
        %1230 = vmatpush1.msra.mxu0 0.0
        %1231 = vmatprep.subr.mxu0 0.0
        %1232 = vmatpush1.msra.mxu0 0.0
        %1233 = vmatprep.mubr.f32.mxu0 0.0
        %v1234 = vand.u32 %v779, 4294901760
        %1235 = vmatmul.mubr.f32.gmra.mrb[0].mxu0 %v1234
        %v1236 = vpop.f32.mrb[0].mxu0
        %v1237 = vadd.f32 %v1164, %v1236
        %v1238 = vpop.f32.mrb[0].mxu0
        %1239 = vdwg.mxu0
        %1240 = vst [vmem:[%s237] sm:$0xf] %v1237
        %s1241 = sand.u32 %s153, 1
        %s1242 = scalar_lea.sflag [#allocation3], %s1241
        %s1243 = sand.u32 %s153, 1
        %s1244 = smul.addr %s1243, 4
        %s1245 = scalar_lea.vmem [#allocation2], %s1244
        // Predicated region
        $region41: #{tpu_custom_call.1} parent=39 // pred_check
          %p1246 = pneg %p163
        $region42: #{tpu_custom_call.1} parent=39 // pred_check_branch
          %1248 = sbr.rel (%p1246) target = $region44
        $region43: #{tpu_custom_call.1} parent=39 // pred_region
          %s1250 = ssub.s32 64, 64
          %1251 = vsyncadd %s1242, %s1250
          %s1252 = sadd.s32 %s24, %s23
          %s1253 = smul.addr %s1252, 64
          %s1254 = scalar_lea.hbm %s5, %s1253
          %s1256 = sshll.u32 %s1245, 4
          %s1257 = int_to_ptr.vmem [resolvable:$true] %s1256
          %1259 = dma.vmem_to_hbm [thread:$0]  %s1257, 64, %s1254, %s1242
        $region44: #{tpu_custom_call.1} parent=39 // pred_fallthru
          _
      $region40: #{tpu_custom_call.1} parent=5 // pred_fallthru
        _
      %p1260 = scmp.le.s32.totalorder 2, %s14
      // Predicated region
      $region45: #{tpu_custom_call.1} parent=5 // pred_check
        %p1261 = pneg %p1260
      $region46: #{tpu_custom_call.1} parent=5 // pred_check_branch
        %1263 = sbr.rel (%p1261) target = $region48
      $region47: #{tpu_custom_call.1} parent=5 // pred_region
        %s1264 = ssub.s32 %s14, 2
        // Predicated region
        $region49: #{tpu_custom_call.1} parent=47 // pred_check
          %p1265 = pneg %p169
        $region50: #{tpu_custom_call.1} parent=47 // pred_check_branch
          %1267 = sbr.rel (%p1265) target = $region52
        $region51: #{tpu_custom_call.1} parent=47 // pred_region
          %s1268 = sand.u32 %s154, 1
          %s1269 = scalar_lea.sflag [#allocation3], %s1268
          %s1270 = sand.u32 %s154, 1
          %s1271 = smul.addr %s1270, 4
          %s1272 = scalar_lea.vmem [#allocation2], %s1271
          %1273 = dma.done %s1269, 64
        $region52: #{tpu_custom_call.1} parent=47 // pred_fallthru
          _
      $region48: #{tpu_custom_call.1} parent=5 // pred_fallthru
        _
    $region6: #{tpu_custom_call.1} parent=1 // loop_footer
      %s18 = sadd.s32 1, %s14
    $region7: #{tpu_custom_call.1} parent=1 // loop_footer_branch
      %13 = sbr.rel target = $region3
    $region8: #{tpu_custom_call.1} parent=1 // loop_exit
      _
    %1274 = vsyncpa [#allocation3], 1
    %s1275 = scalar_lea.sflag [#allocation3], 1
    %1276 = vsyncpa %s1275, 1

</llo_original>
